<compile_context>
chip_gen: v5e
topology: v5e:2x2
jax: 0.10.0
libtpu: 0.0.40
codegen_flags: <defaults>
</compile_context>

<pallas_src>
import functools

import jax
import jax.numpy as jnp
from jax import lax
from jax.experimental import pallas as pl
from jax.experimental.pallas import tpu as pltpu


def _variance_adaptor_kernel(
    x_ref, mask_ref,
    wdp1_ref, wdp2_ref, dpv_ref,      # fused duration+pitch predictor
    we1_ref, we2_ref, ev_ref,         # energy predictor
    bins_ref, emb_ref,
    out_ref, scal_ref,
    *, seq_len, d_factor, p_factor, e_factor, compute_dtype,
):
    N, C = x_ref.shape                  # N = Bblk * T (flattened rows)
    T = seq_len
    Bblk = N // T
    H = ev_ref.shape[1]
    n_bins = emb_ref.shape[1]
    M = out_ref.shape[1]
    f32 = jnp.float32

    x = x_ref[...]                      # (N, C)
    pad = mask_ref[...]                 # (N, 1), 1.0 where padded

    # Row position within its own sequence (block holds Bblk stacked sequences).
    pos_t = lax.broadcasted_iota(jnp.int32, (T, 1), 0)
    pos = jnp.concatenate([pos_t] * Bblk, axis=0)          # (N, 1)
    is_first = pos == 0
    is_last = pos == T - 1

    def mxu(a, w):
        return jnp.dot(a.astype(compute_dtype), w.astype(compute_dtype),
                       preferred_element_type=f32)

    def k3_pack(h):
        """[h[t-1] | h[t] | h[t+1]] along lanes; zero at sequence boundaries."""
        cin = h.shape[1]
        z = jnp.zeros((1, cin), f32)
        hm1 = jnp.where(is_first, 0.0, jnp.concatenate([z, h[:-1, :]], axis=0))
        hp1 = jnp.where(is_last, 0.0, jnp.concatenate([h[1:, :], z], axis=0))
        return jnp.concatenate([hm1, h, hp1], axis=1)      # (N, 3*cin)

    def group_ln(y, gamma, beta, ngroups, eps=1e-5):
        """LayerNorm with per-predictor statistics over groups of H lanes."""
        parts = []
        for g in range(ngroups):
            yg = y[:, g * H:(g + 1) * H]
            mu = jnp.mean(yg, axis=-1, keepdims=True)
            var = jnp.mean(jnp.square(yg - mu), axis=-1, keepdims=True)
            parts.append((yg - mu) * lax.rsqrt(var + eps))
        yh = parts[0] if ngroups == 1 else jnp.concatenate(parts, axis=1)
        return yh * gamma + beta

    def predictor(h_in, w1_ref, w2_ref, v_ref, ngroups):
        # v_ref rows: 0 conv1 bias, 1 ln1 gamma, 2 ln1 beta, 3 conv2 bias,
        #             4 ln2 gamma, 5 ln2 beta, 6 proj weight, 7 proj bias.
        h = jnp.maximum(mxu(k3_pack(h_in), w1_ref[...]) + v_ref[0:1, :], 0.0)
        h = group_ln(h, v_ref[1:2, :], v_ref[2:3, :], ngroups)   # dropout = identity (eval)
        h = jnp.maximum(mxu(k3_pack(h), w2_ref[...]) + v_ref[3:4, :], 0.0)
        h = group_ln(h, v_ref[4:5, :], v_ref[5:6, :], ngroups)
        s = h * v_ref[6:7, :]
        return [jnp.sum(s[:, g * H:(g + 1) * H], axis=-1, keepdims=True)
                + v_ref[7:8, g * H:g * H + 1]
                for g in range(ngroups)]                         # ngroups x (N, 1)

    def bucketize_embed(vals, which):
        # torch.bucketize(v, bins, right=False) == count(bins < v); bins are padded
        # with +inf sentinels so the lane-aligned tail never contributes.
        bins = bins_ref[which:which + 1, :]                                    # (1, nb_pad)
        idx = jnp.sum((vals > bins).astype(jnp.int32), axis=1, keepdims=True)  # (N, 1)
        iota = lax.broadcasted_iota(jnp.int32, (N, n_bins), 1)
        onehot = (iota == idx).astype(f32)
        # one-hot @ table kept in f32 -> bit-exact embedding gather
        return jnp.dot(onehot, emb_ref[which], preferred_element_type=f32)     # (N, C)

    # ---- duration + pitch predictors (fused: both read the same x) ---------
    log_dur, pitch = predictor(x, wdp1_ref, wdp2_ref, dpv_ref, 2)
    pitch = pitch * p_factor

    dur = jnp.round((jnp.exp(log_dur) - 1.0) * d_factor)
    dur = jnp.maximum(dur, 0.0)
    dur = jnp.where(pad > 0.5, 0.0, dur)          # (N, 1), integer-valued float

    x = x + bucketize_embed(pitch, 0)

    # ---- energy predictor (consumes x + pitch_emb) --------------------------
    (energy,) = predictor(x, we1_ref, we2_ref, ev_ref, 1)
    energy = energy * e_factor
    x = x + bucketize_embed(energy, 1)

    # ---- packed per-frame scalars: single packed store per step -------------
    scal = jnp.concatenate(
        [log_dur, pitch, energy, dur, jnp.zeros((N, 4), f32)], axis=1)  # (N, 8)
    scal_ref[...] = scal

    # ---- length regulator ----------------------------------------------------
    # out[j] = x[t] for cum[t]-dur[t] <= j < cum[t]; cum via O(T log T) doubling
    # scan on the (T,1) column (exact in f32 while sum(dur) < 2^24).
    for b in range(Bblk):                         # small static loop
        dur_b = dur[b * T:(b + 1) * T, :]         # (T, 1)
        x_b = x[b * T:(b + 1) * T, :]             # (T, C)
        cum = dur_b
        k = 1
        while k < T:                              # Hillis-Steele inclusive scan
            cum = cum + jnp.concatenate(
                [jnp.zeros((k, 1), f32), cum[:T - k, :]], axis=0)
            k *= 2
        start_i = (cum - dur_b).astype(jnp.int32)
        cum_i = cum.astype(jnp.int32)
        j = lax.broadcasted_iota(jnp.int32, (T, M), 1)
        p_tm = jnp.logical_and(j >= start_i, j < cum_i).astype(f32)     # (T, M)
        # out_b = P^T @ x_b (contract over T, the leading axis of both operands)
        out_ref[b, :, :] = lax.dot_general(
            p_tm, x_b, (((0,), (0,)), ((), ())), preferred_element_type=f32)


def variance_adaptor(params, x, padding_mask, *, d_factor=1.0, p_factor=1.0,
                     e_factor=1.0, max_out_len=32, batch_block=2,
                     compute_dtype=jnp.float32):
    """Returns (x_regulated, out_lens, log_dur_out, pitch_out, energy_out)."""
    B, T, C = x.shape
    (c1w, c1b, l1g, l1b, c2w, c2b, l2g, l2b, pw, pb, bins, emb) = params
    n_bins = emb.shape[1]
    H = c1b.shape[1]
    K = c1w.shape[1]                              # conv kernel size (3)
    M = int(max_out_len)
    Bblk = int(batch_block)
    if B % Bblk != 0:
        Bblk = 1
    f32 = jnp.float32

    # ---- host-side weight plumbing (layout only; free w.r.t. the kernel) ----
    # Conv weights flattened to (K*Cin, Cout); row order [tap0 | tap1 | tap2]
    # matches the kernel's k3_pack lane order [h[t-1] | h[t] | h[t+1]].
    wdp1 = jnp.concatenate([c1w[0], c1w[1]], axis=2).reshape(K * C, 2 * H)
    we1 = c1w[2].reshape(K * C, H)
    zhh = jnp.zeros((K, H, H), f32)
    wdp2 = jnp.concatenate(                       # per-tap block-diagonal (2H, 2H)
        [jnp.concatenate([c2w[0], zhh], axis=2),
         jnp.concatenate([zhh, c2w[1]], axis=2)], axis=1).reshape(K * 2 * H, 2 * H)
    we2 = c2w[2].reshape(K * H, H)

    def cat2(a):                                  # concat duration/pitch rows
        return jnp.concatenate([a[0], a[1]])

    dpv = jnp.stack([cat2(c1b), cat2(l1g), cat2(l1b), cat2(c2b), cat2(l2g),
                     cat2(l2b), cat2(pw),
                     jnp.concatenate([jnp.full((H,), pb[0, 0], f32),
                                      jnp.full((H,), pb[1, 0], f32)])])   # (8, 2H)
    ev = jnp.stack([c1b[2], l1g[2], l1b[2], c2b[2], l2g[2], l2b[2], pw[2],
                    jnp.full((H,), pb[2, 0], f32)])                        # (8, H)

    # bins padded on the lane axis with +inf sentinels (n_bins-1 -> 128 multiple)
    nb_pad = pl.cdiv(n_bins - 1, 128) * 128
    bins_pad = jnp.concatenate(
        [bins, jnp.full((2, nb_pad - (n_bins - 1)), jnp.inf, f32)], axis=1)

    # flatten batch*time so the kernel works on one lane-/sublane-friendly slab
    x_flat = x.reshape(B * T, C)
    mask_flat = padding_mask.astype(f32).reshape(B * T, 1)

    kernel = functools.partial(
        _variance_adaptor_kernel,
        seq_len=int(T), d_factor=float(d_factor), p_factor=float(p_factor),
        e_factor=float(e_factor), compute_dtype=compute_dtype,
    )

    def full_spec(a):
        nd = a.ndim
        return pl.BlockSpec(a.shape, lambda i, _nd=nd: (0,) * _nd)

    NB = Bblk * T
    in_specs = [
        pl.BlockSpec((NB, C), lambda i: (i, 0)),       # x (flattened B*T rows)
        pl.BlockSpec((NB, 1), lambda i: (i, 0)),       # padding mask
        full_spec(wdp1), full_spec(wdp2), full_spec(dpv),
        full_spec(we1), full_spec(we2), full_spec(ev),
        full_spec(bins_pad), full_spec(emb),
    ]
    out_shape = (
        jax.ShapeDtypeStruct((B, M, C), f32),          # regulated output
        jax.ShapeDtypeStruct((B * T, 8), f32),         # packed per-frame scalars
    )
    out_specs = (
        pl.BlockSpec((Bblk, M, C), lambda i: (i, 0, 0)),
        pl.BlockSpec((NB, 8), lambda i: (i, 0)),
    )

    out, scal = pl.pallas_call(
        kernel,
        grid=(B // Bblk,),
        in_specs=in_specs,
        out_specs=out_specs,
        out_shape=out_shape,
        compiler_params=pltpu.CompilerParams(
            dimension_semantics=("parallel",),         # batch blocks independent
        ),
    )(x_flat, mask_flat, wdp1, wdp2, dpv, we1, we2, ev, bins_pad, emb)

    scal = scal.reshape(B, T, 8)
    log_dur = scal[..., 0]
    pitch = scal[..., 1]
    energy = scal[..., 2]
    dur = scal[..., 3]
    # TODO(synk): out_lens is clamped to the static cap max_out_len (the
    # reference reports the unclamped sum and sizes the output dynamically).
    out_lens = jnp.minimum(jnp.sum(dur, axis=1), float(M)).astype(jnp.int32)
    return out, out_lens, log_dur, pitch, energy


def init_params(key, *, encoder_embed_dim, var_pred_hidden_dim, n_bins,
                pitch_min=-2.0, pitch_max=2.0, energy_min=-2.0, energy_max=2.0):
    """Deterministic synthetic parameters. 3 stacked predictors: [dur, pitch, energy]."""
    C, H, K = encoder_embed_dim, var_pred_hidden_dim, 3
    ks = jax.random.split(key, 6)
    scale = 0.1
    c1w = jax.random.normal(ks[0], (3, K, C, H), jnp.float32) * scale  # == torch W[:, :, k].T
    c1b = jax.random.normal(ks[1], (3, H), jnp.float32) * scale
    l1g = jnp.ones((3, H), jnp.float32)
    l1b = jnp.zeros((3, H), jnp.float32)
    c2w = jax.random.normal(ks[2], (3, K, H, H), jnp.float32) * scale
    c2b = jax.random.normal(ks[3], (3, H), jnp.float32) * scale
    l2g = jnp.ones((3, H), jnp.float32)
    l2b = jnp.zeros((3, H), jnp.float32)
    pw = jax.random.normal(ks[4], (3, H), jnp.float32) * scale
    # give the duration predictor a positive bias so exp(log_dur)-1 rounds to >= 1
    pb = jnp.array([[1.0], [0.0], [0.0]], jnp.float32)
    bins = jnp.stack([
        jnp.linspace(pitch_min, pitch_max, n_bins - 1),
        jnp.linspace(energy_min, energy_max, n_bins - 1),
    ]).astype(jnp.float32)                                             # (2, n_bins-1)
    emb = jax.random.normal(ks[5], (2, n_bins, C), jnp.float32) * (C ** -0.5)
    return (c1w, c1b, l1g, l1b, c2w, c2b, l2g, l2b, pw, pb, bins, emb)


if __name__ == "__main__":
    B, T, C, H, N_BINS, MAX_OUT = 4, 8, 32, 32, 64, 32

    key = jax.random.PRNGKey(0)
    kx, kp = jax.random.split(key)
    params = init_params(kp, encoder_embed_dim=C, var_pred_hidden_dim=H, n_bins=N_BINS)

    x = jax.random.normal(kx, (B, T, C), jnp.float32)
    padding_mask = jnp.zeros((B, T), jnp.bool_).at[1, T - 2:].set(True)

    outs = variance_adaptor(params, x, padding_mask,
                            d_factor=1.0, p_factor=1.0, e_factor=1.0,
                            max_out_len=MAX_OUT, batch_block=2)
    outs = jax.block_until_ready(outs)

    x_reg, out_lens, log_dur, pitch, energy = outs
    assert x_reg.shape == (B, MAX_OUT, C)
    assert out_lens.shape == (B,)
    assert log_dur.shape == (B, T) and pitch.shape == (B, T) and energy.shape == (B, T)
    assert bool(jnp.all(jnp.isfinite(x_reg)))
    assert bool(jnp.all(jnp.isfinite(log_dur)))
    print("KERNEL_OK")
</pallas_src>

<mosaic_0001>
module attributes {stable_mosaic.version = 11 : i64} {
  func.func @_variance_adaptor_kernel(%arg0: i32, %arg1: memref<16x32xf32, #tpu.memory_space<vmem>>, %arg2: memref<16x1xf32, #tpu.memory_space<vmem>>, %arg3: memref<96x64xf32, #tpu.memory_space<vmem>>, %arg4: memref<192x64xf32, #tpu.memory_space<vmem>>, %arg5: memref<8x64xf32, #tpu.memory_space<vmem>>, %arg6: memref<96x32xf32, #tpu.memory_space<vmem>>, %arg7: memref<96x32xf32, #tpu.memory_space<vmem>>, %arg8: memref<8x32xf32, #tpu.memory_space<vmem>>, %arg9: memref<2x128xf32, #tpu.memory_space<vmem>>, %arg10: memref<2x64x32xf32, #tpu.memory_space<vmem>>, %arg11: memref<2x32x32xf32, #tpu.memory_space<vmem>>, %arg12: memref<16x8xf32, #tpu.memory_space<vmem>>) attributes {dimension_semantics = [#tpu.dimension_semantics<parallel>], iteration_bounds = array<i64: 2>, scalar_prefetch = 0 : i64, scratch_operands = 0 : i64, tpu.core_type = #tpu.core_type<tc>, window_params = [{transform_indices = @transform_0, window_bounds = array<i64: 16, 32>}, {transform_indices = @transform_1, window_bounds = array<i64: 16, 1>}, {pipeline_mode = #tpu.pipeline_mode<synchronous>, transform_indices = @transform_2, window_bounds = array<i64: 96, 64>}, {pipeline_mode = #tpu.pipeline_mode<synchronous>, transform_indices = @transform_3, window_bounds = array<i64: 192, 64>}, {pipeline_mode = #tpu.pipeline_mode<synchronous>, transform_indices = @transform_4, window_bounds = array<i64: 8, 64>}, {pipeline_mode = #tpu.pipeline_mode<synchronous>, transform_indices = @transform_5, window_bounds = array<i64: 96, 32>}, {pipeline_mode = #tpu.pipeline_mode<synchronous>, transform_indices = @transform_6, window_bounds = array<i64: 96, 32>}, {pipeline_mode = #tpu.pipeline_mode<synchronous>, transform_indices = @transform_7, window_bounds = array<i64: 8, 32>}, {pipeline_mode = #tpu.pipeline_mode<synchronous>, transform_indices = @transform_8, window_bounds = array<i64: 2, 128>}, {pipeline_mode = #tpu.pipeline_mode<synchronous>, transform_indices = @transform_9, window_bounds = array<i64: 2, 64, 32>}, {transform_indices = @transform_10, window_bounds = array<i64: 2, 32, 32>}, {transform_indices = @transform_11, window_bounds = array<i64: 16, 8>}]} {
    %c0 = arith.constant 0 : index
    %c0_0 = arith.constant 0 : index
    %0 = vector.load %arg1[%c0, %c0_0] : memref<16x32xf32, #tpu.memory_space<vmem>>, vector<16x32xf32>
    %c0_1 = arith.constant 0 : index
    %c0_2 = arith.constant 0 : index
    %1 = vector.load %arg2[%c0_1, %c0_2] : memref<16x1xf32, #tpu.memory_space<vmem>>, vector<16x1xf32>
    %2 = tpu.iota {dimensions = array<i32: 0>} : vector<8x1xi32>
    %3 = tpu.concatenate %2, %2 in 0 : vector<8x1xi32>, vector<8x1xi32> -> vector<16x1xi32>
    %c0_i32 = arith.constant 0 : i32
    %4 = vector.broadcast %c0_i32 : i32 to vector<16x1xi32>
    %5 = arith.cmpi eq, %3, %4 : vector<16x1xi32>
    %c7_i32 = arith.constant 7 : i32
    %6 = vector.broadcast %c7_i32 : i32 to vector<16x1xi32>
    %7 = arith.cmpi eq, %3, %6 : vector<16x1xi32>
    %cst = arith.constant 0.000000e+00 : f32
    %8 = vector.broadcast %cst : f32 to vector<1x32xf32>
    %9 = vector.extract_strided_slice %0 {offsets = [0, 0], sizes = [15, 32], strides = [1, 1]} : vector<16x32xf32> to vector<15x32xf32>
    %10 = tpu.concatenate %8, %9 in 0 : vector<1x32xf32>, vector<15x32xf32> -> vector<16x32xf32>
    %cst_3 = arith.constant 0.000000e+00 : f32
    %11 = vector.shape_cast %5 : vector<16x1xi1> to vector<16x1xi1>
    %12 = vector.broadcast %11 : vector<16x1xi1> to vector<16x32xi1>
    %13 = vector.broadcast %cst_3 : f32 to vector<16x32xf32>
    %14 = arith.select %12, %13, %10 : vector<16x32xi1>, vector<16x32xf32>
    %15 = vector.extract_strided_slice %0 {offsets = [1, 0], sizes = [15, 32], strides = [1, 1]} : vector<16x32xf32> to vector<15x32xf32>
    %16 = tpu.concatenate %15, %8 in 0 : vector<15x32xf32>, vector<1x32xf32> -> vector<16x32xf32>
    %cst_4 = arith.constant 0.000000e+00 : f32
    %17 = vector.shape_cast %7 : vector<16x1xi1> to vector<16x1xi1>
    %18 = vector.broadcast %17 : vector<16x1xi1> to vector<16x32xi1>
    %19 = vector.broadcast %cst_4 : f32 to vector<16x32xf32>
    %20 = arith.select %18, %19, %16 : vector<16x32xi1>, vector<16x32xf32>
    %21 = tpu.concatenate %14, %0, %20 in 1 : vector<16x32xf32>, vector<16x32xf32>, vector<16x32xf32> -> vector<16x96xf32>
    %c0_5 = arith.constant 0 : index
    %c0_6 = arith.constant 0 : index
    %22 = vector.load %arg3[%c0_5, %c0_6] : memref<96x64xf32, #tpu.memory_space<vmem>>, vector<96x64xf32>
    %cst_7 = arith.constant dense<0.000000e+00> : vector<16x64xf32>
    %23 = tpu.matmul %21, %22, %cst_7 {dimension_numbers = #tpu.dot_dimension_numbers<[1], [0], [0], [1], [0, 0, 1, 1], [], []>} : vector<16x96xf32>, vector<96x64xf32>, vector<16x64xf32> -> vector<16x64xf32>
    %c0_8 = arith.constant 0 : index
    %c0_9 = arith.constant 0 : index
    %24 = vector.load %arg5[%c0_8, %c0_9] : memref<8x64xf32, #tpu.memory_space<vmem>>, vector<1x64xf32>
    %25 = vector.broadcast %24 : vector<1x64xf32> to vector<16x64xf32>
    %26 = arith.addf %23, %25 : vector<16x64xf32>
    %cst_10 = arith.constant 0.000000e+00 : f32
    %27 = vector.broadcast %cst_10 : f32 to vector<16x64xf32>
    %28 = arith.maximumf %26, %27 : vector<16x64xf32>
    %c1 = arith.constant 1 : index
    %c0_11 = arith.constant 0 : index
    %29 = vector.load %arg5[%c1, %c0_11] : memref<8x64xf32, #tpu.memory_space<vmem>>, vector<1x64xf32>
    %c2 = arith.constant 2 : index
    %c0_12 = arith.constant 0 : index
    %30 = vector.load %arg5[%c2, %c0_12] : memref<8x64xf32, #tpu.memory_space<vmem>>, vector<1x64xf32>
    %31 = vector.extract_strided_slice %28 {offsets = [0, 0], sizes = [16, 32], strides = [1, 1]} : vector<16x64xf32> to vector<16x32xf32>
    %cst_13 = arith.constant dense<0.000000e+00> : vector<16xf32>
    %32 = vector.multi_reduction <add>, %31, %cst_13 [1] : vector<16x32xf32> to vector<16xf32>
    %33 = vector.shape_cast %32 : vector<16xf32> to vector<16x1xf32>
    %cst_14 = arith.constant 3.200000e+01 : f32
    %34 = vector.broadcast %cst_14 : f32 to vector<16x1xf32>
    %35 = arith.divf %33, %34 : vector<16x1xf32>
    %36 = vector.broadcast %35 : vector<16x1xf32> to vector<16x32xf32>
    %37 = arith.subf %31, %36 : vector<16x32xf32>
    %38 = arith.mulf %37, %37 : vector<16x32xf32>
    %cst_15 = arith.constant dense<0.000000e+00> : vector<16xf32>
    %39 = vector.multi_reduction <add>, %38, %cst_15 [1] : vector<16x32xf32> to vector<16xf32>
    %40 = vector.shape_cast %39 : vector<16xf32> to vector<16x1xf32>
    %cst_16 = arith.constant 3.200000e+01 : f32
    %41 = vector.broadcast %cst_16 : f32 to vector<16x1xf32>
    %42 = arith.divf %40, %41 : vector<16x1xf32>
    %43 = vector.broadcast %35 : vector<16x1xf32> to vector<16x32xf32>
    %44 = arith.subf %31, %43 : vector<16x32xf32>
    %cst_17 = arith.constant 9.99999974E-6 : f32
    %45 = vector.broadcast %cst_17 : f32 to vector<16x1xf32>
    %46 = arith.addf %42, %45 : vector<16x1xf32>
    %47 = math.rsqrt %46 : vector<16x1xf32>
    %48 = vector.broadcast %47 : vector<16x1xf32> to vector<16x32xf32>
    %49 = arith.mulf %44, %48 : vector<16x32xf32>
    %50 = vector.extract_strided_slice %28 {offsets = [0, 32], sizes = [16, 32], strides = [1, 1]} : vector<16x64xf32> to vector<16x32xf32>
    %cst_18 = arith.constant dense<0.000000e+00> : vector<16xf32>
    %51 = vector.multi_reduction <add>, %50, %cst_18 [1] : vector<16x32xf32> to vector<16xf32>
    %52 = vector.shape_cast %51 : vector<16xf32> to vector<16x1xf32>
    %cst_19 = arith.constant 3.200000e+01 : f32
    %53 = vector.broadcast %cst_19 : f32 to vector<16x1xf32>
    %54 = arith.divf %52, %53 : vector<16x1xf32>
    %55 = vector.broadcast %54 : vector<16x1xf32> to vector<16x32xf32>
    %56 = arith.subf %50, %55 : vector<16x32xf32>
    %57 = arith.mulf %56, %56 : vector<16x32xf32>
    %cst_20 = arith.constant dense<0.000000e+00> : vector<16xf32>
    %58 = vector.multi_reduction <add>, %57, %cst_20 [1] : vector<16x32xf32> to vector<16xf32>
    %59 = vector.shape_cast %58 : vector<16xf32> to vector<16x1xf32>
    %cst_21 = arith.constant 3.200000e+01 : f32
    %60 = vector.broadcast %cst_21 : f32 to vector<16x1xf32>
    %61 = arith.divf %59, %60 : vector<16x1xf32>
    %62 = vector.broadcast %54 : vector<16x1xf32> to vector<16x32xf32>
    %63 = arith.subf %50, %62 : vector<16x32xf32>
    %cst_22 = arith.constant 9.99999974E-6 : f32
    %64 = vector.broadcast %cst_22 : f32 to vector<16x1xf32>
    %65 = arith.addf %61, %64 : vector<16x1xf32>
    %66 = math.rsqrt %65 : vector<16x1xf32>
    %67 = vector.broadcast %66 : vector<16x1xf32> to vector<16x32xf32>
    %68 = arith.mulf %63, %67 : vector<16x32xf32>
    %69 = tpu.concatenate %49, %68 in 1 : vector<16x32xf32>, vector<16x32xf32> -> vector<16x64xf32>
    %70 = vector.broadcast %29 : vector<1x64xf32> to vector<16x64xf32>
    %71 = arith.mulf %69, %70 : vector<16x64xf32>
    %72 = vector.broadcast %30 : vector<1x64xf32> to vector<16x64xf32>
    %73 = arith.addf %71, %72 : vector<16x64xf32>
    %cst_23 = arith.constant 0.000000e+00 : f32
    %74 = vector.broadcast %cst_23 : f32 to vector<1x64xf32>
    %75 = vector.extract_strided_slice %73 {offsets = [0, 0], sizes = [15, 64], strides = [1, 1]} : vector<16x64xf32> to vector<15x64xf32>
    %76 = tpu.concatenate %74, %75 in 0 : vector<1x64xf32>, vector<15x64xf32> -> vector<16x64xf32>
    %cst_24 = arith.constant 0.000000e+00 : f32
    %77 = vector.shape_cast %5 : vector<16x1xi1> to vector<16x1xi1>
    %78 = vector.broadcast %77 : vector<16x1xi1> to vector<16x64xi1>
    %79 = vector.broadcast %cst_24 : f32 to vector<16x64xf32>
    %80 = arith.select %78, %79, %76 : vector<16x64xi1>, vector<16x64xf32>
    %81 = vector.extract_strided_slice %73 {offsets = [1, 0], sizes = [15, 64], strides = [1, 1]} : vector<16x64xf32> to vector<15x64xf32>
    %82 = tpu.concatenate %81, %74 in 0 : vector<15x64xf32>, vector<1x64xf32> -> vector<16x64xf32>
    %cst_25 = arith.constant 0.000000e+00 : f32
    %83 = vector.shape_cast %7 : vector<16x1xi1> to vector<16x1xi1>
    %84 = vector.broadcast %83 : vector<16x1xi1> to vector<16x64xi1>
    %85 = vector.broadcast %cst_25 : f32 to vector<16x64xf32>
    %86 = arith.select %84, %85, %82 : vector<16x64xi1>, vector<16x64xf32>
    %87 = tpu.concatenate %80, %73, %86 in 1 : vector<16x64xf32>, vector<16x64xf32>, vector<16x64xf32> -> vector<16x192xf32>
    %c0_26 = arith.constant 0 : index
    %c0_27 = arith.constant 0 : index
    %88 = vector.load %arg4[%c0_26, %c0_27] : memref<192x64xf32, #tpu.memory_space<vmem>>, vector<192x64xf32>
    %cst_28 = arith.constant dense<0.000000e+00> : vector<16x64xf32>
    %89 = tpu.matmul %87, %88, %cst_28 {dimension_numbers = #tpu.dot_dimension_numbers<[1], [0], [0], [1], [0, 0, 1, 1], [], []>} : vector<16x192xf32>, vector<192x64xf32>, vector<16x64xf32> -> vector<16x64xf32>
    %c3 = arith.constant 3 : index
    %c0_29 = arith.constant 0 : index
    %90 = vector.load %arg5[%c3, %c0_29] : memref<8x64xf32, #tpu.memory_space<vmem>>, vector<1x64xf32>
    %91 = vector.broadcast %90 : vector<1x64xf32> to vector<16x64xf32>
    %92 = arith.addf %89, %91 : vector<16x64xf32>
    %cst_30 = arith.constant 0.000000e+00 : f32
    %93 = vector.broadcast %cst_30 : f32 to vector<16x64xf32>
    %94 = arith.maximumf %92, %93 : vector<16x64xf32>
    %c4 = arith.constant 4 : index
    %c0_31 = arith.constant 0 : index
    %95 = vector.load %arg5[%c4, %c0_31] : memref<8x64xf32, #tpu.memory_space<vmem>>, vector<1x64xf32>
    %c5 = arith.constant 5 : index
    %c0_32 = arith.constant 0 : index
    %96 = vector.load %arg5[%c5, %c0_32] : memref<8x64xf32, #tpu.memory_space<vmem>>, vector<1x64xf32>
    %97 = vector.extract_strided_slice %94 {offsets = [0, 0], sizes = [16, 32], strides = [1, 1]} : vector<16x64xf32> to vector<16x32xf32>
    %cst_33 = arith.constant dense<0.000000e+00> : vector<16xf32>
    %98 = vector.multi_reduction <add>, %97, %cst_33 [1] : vector<16x32xf32> to vector<16xf32>
    %99 = vector.shape_cast %98 : vector<16xf32> to vector<16x1xf32>
    %cst_34 = arith.constant 3.200000e+01 : f32
    %100 = vector.broadcast %cst_34 : f32 to vector<16x1xf32>
    %101 = arith.divf %99, %100 : vector<16x1xf32>
    %102 = vector.broadcast %101 : vector<16x1xf32> to vector<16x32xf32>
    %103 = arith.subf %97, %102 : vector<16x32xf32>
    %104 = arith.mulf %103, %103 : vector<16x32xf32>
    %cst_35 = arith.constant dense<0.000000e+00> : vector<16xf32>
    %105 = vector.multi_reduction <add>, %104, %cst_35 [1] : vector<16x32xf32> to vector<16xf32>
    %106 = vector.shape_cast %105 : vector<16xf32> to vector<16x1xf32>
    %cst_36 = arith.constant 3.200000e+01 : f32
    %107 = vector.broadcast %cst_36 : f32 to vector<16x1xf32>
    %108 = arith.divf %106, %107 : vector<16x1xf32>
    %109 = vector.broadcast %101 : vector<16x1xf32> to vector<16x32xf32>
    %110 = arith.subf %97, %109 : vector<16x32xf32>
    %cst_37 = arith.constant 9.99999974E-6 : f32
    %111 = vector.broadcast %cst_37 : f32 to vector<16x1xf32>
    %112 = arith.addf %108, %111 : vector<16x1xf32>
    %113 = math.rsqrt %112 : vector<16x1xf32>
    %114 = vector.broadcast %113 : vector<16x1xf32> to vector<16x32xf32>
    %115 = arith.mulf %110, %114 : vector<16x32xf32>
    %116 = vector.extract_strided_slice %94 {offsets = [0, 32], sizes = [16, 32], strides = [1, 1]} : vector<16x64xf32> to vector<16x32xf32>
    %cst_38 = arith.constant dense<0.000000e+00> : vector<16xf32>
    %117 = vector.multi_reduction <add>, %116, %cst_38 [1] : vector<16x32xf32> to vector<16xf32>
    %118 = vector.shape_cast %117 : vector<16xf32> to vector<16x1xf32>
    %cst_39 = arith.constant 3.200000e+01 : f32
    %119 = vector.broadcast %cst_39 : f32 to vector<16x1xf32>
    %120 = arith.divf %118, %119 : vector<16x1xf32>
    %121 = vector.broadcast %120 : vector<16x1xf32> to vector<16x32xf32>
    %122 = arith.subf %116, %121 : vector<16x32xf32>
    %123 = arith.mulf %122, %122 : vector<16x32xf32>
    %cst_40 = arith.constant dense<0.000000e+00> : vector<16xf32>
    %124 = vector.multi_reduction <add>, %123, %cst_40 [1] : vector<16x32xf32> to vector<16xf32>
    %125 = vector.shape_cast %124 : vector<16xf32> to vector<16x1xf32>
    %cst_41 = arith.constant 3.200000e+01 : f32
    %126 = vector.broadcast %cst_41 : f32 to vector<16x1xf32>
    %127 = arith.divf %125, %126 : vector<16x1xf32>
    %128 = vector.broadcast %120 : vector<16x1xf32> to vector<16x32xf32>
    %129 = arith.subf %116, %128 : vector<16x32xf32>
    %cst_42 = arith.constant 9.99999974E-6 : f32
    %130 = vector.broadcast %cst_42 : f32 to vector<16x1xf32>
    %131 = arith.addf %127, %130 : vector<16x1xf32>
    %132 = math.rsqrt %131 : vector<16x1xf32>
    %133 = vector.broadcast %132 : vector<16x1xf32> to vector<16x32xf32>
    %134 = arith.mulf %129, %133 : vector<16x32xf32>
    %135 = tpu.concatenate %115, %134 in 1 : vector<16x32xf32>, vector<16x32xf32> -> vector<16x64xf32>
    %136 = vector.broadcast %95 : vector<1x64xf32> to vector<16x64xf32>
    %137 = arith.mulf %135, %136 : vector<16x64xf32>
    %138 = vector.broadcast %96 : vector<1x64xf32> to vector<16x64xf32>
    %139 = arith.addf %137, %138 : vector<16x64xf32>
    %c6 = arith.constant 6 : index
    %c0_43 = arith.constant 0 : index
    %140 = vector.load %arg5[%c6, %c0_43] : memref<8x64xf32, #tpu.memory_space<vmem>>, vector<1x64xf32>
    %141 = vector.broadcast %140 : vector<1x64xf32> to vector<16x64xf32>
    %142 = arith.mulf %139, %141 : vector<16x64xf32>
    %143 = vector.extract_strided_slice %142 {offsets = [0, 0], sizes = [16, 32], strides = [1, 1]} : vector<16x64xf32> to vector<16x32xf32>
    %cst_44 = arith.constant dense<0.000000e+00> : vector<16xf32>
    %144 = vector.multi_reduction <add>, %143, %cst_44 [1] : vector<16x32xf32> to vector<16xf32>
    %145 = vector.shape_cast %144 : vector<16xf32> to vector<16x1xf32>
    %c7 = arith.constant 7 : index
    %c0_45 = arith.constant 0 : index
    %146 = vector.load %arg5[%c7, %c0_45] : memref<8x64xf32, #tpu.memory_space<vmem>>, vector<1x1xf32>
    %147 = vector.broadcast %146 : vector<1x1xf32> to vector<16x1xf32>
    %148 = arith.addf %145, %147 : vector<16x1xf32>
    %149 = vector.extract_strided_slice %142 {offsets = [0, 32], sizes = [16, 32], strides = [1, 1]} : vector<16x64xf32> to vector<16x32xf32>
    %cst_46 = arith.constant dense<0.000000e+00> : vector<16xf32>
    %150 = vector.multi_reduction <add>, %149, %cst_46 [1] : vector<16x32xf32> to vector<16xf32>
    %151 = vector.shape_cast %150 : vector<16xf32> to vector<16x1xf32>
    %c7_47 = arith.constant 7 : index
    %c32 = arith.constant 32 : index
    %152 = vector.load %arg5[%c7_47, %c32] : memref<8x64xf32, #tpu.memory_space<vmem>>, vector<1x1xf32>
    %153 = vector.broadcast %152 : vector<1x1xf32> to vector<16x1xf32>
    %154 = arith.addf %151, %153 : vector<16x1xf32>
    %cst_48 = arith.constant 1.000000e+00 : f32
    %155 = vector.broadcast %cst_48 : f32 to vector<16x1xf32>
    %156 = arith.mulf %154, %155 : vector<16x1xf32>
    %157 = math.exp %148 : vector<16x1xf32>
    %cst_49 = arith.constant 1.000000e+00 : f32
    %158 = vector.broadcast %cst_49 : f32 to vector<16x1xf32>
    %159 = arith.subf %157, %158 : vector<16x1xf32>
    %cst_50 = arith.constant 1.000000e+00 : f32
    %160 = vector.broadcast %cst_50 : f32 to vector<16x1xf32>
    %161 = arith.mulf %159, %160 : vector<16x1xf32>
    %162 = math.roundeven %161 : vector<16x1xf32>
    %cst_51 = arith.constant 0.000000e+00 : f32
    %163 = vector.broadcast %cst_51 : f32 to vector<16x1xf32>
    %164 = arith.maximumf %162, %163 : vector<16x1xf32>
    %cst_52 = arith.constant 5.000000e-01 : f32
    %165 = vector.broadcast %cst_52 : f32 to vector<16x1xf32>
    %166 = arith.cmpf ogt, %1, %165 : vector<16x1xf32>
    %cst_53 = arith.constant 0.000000e+00 : f32
    %167 = vector.broadcast %cst_53 : f32 to vector<16x1xf32>
    %168 = arith.select %166, %167, %164 : vector<16x1xi1>, vector<16x1xf32>
    %c0_54 = arith.constant 0 : index
    %c0_55 = arith.constant 0 : index
    %169 = vector.load %arg9[%c0_54, %c0_55] : memref<2x128xf32, #tpu.memory_space<vmem>>, vector<1x128xf32>
    %170 = vector.broadcast %156 : vector<16x1xf32> to vector<16x128xf32>
    %171 = vector.broadcast %169 : vector<1x128xf32> to vector<16x128xf32>
    %172 = arith.cmpf ogt, %170, %171 : vector<16x128xf32>
    %173 = arith.extui %172 : vector<16x128xi1> to vector<16x128xi32>
    %cst_56 = arith.constant dense<0> : vector<16xi32>
    %174 = vector.multi_reduction <add>, %173, %cst_56 [1] : vector<16x128xi32> to vector<16xi32>
    %175 = vector.shape_cast %174 : vector<16xi32> to vector<16x1xi32>
    %176 = tpu.iota {dimensions = array<i32: 1>} : vector<16x64xi32>
    %177 = vector.broadcast %175 : vector<16x1xi32> to vector<16x64xi32>
    %178 = arith.cmpi eq, %176, %177 : vector<16x64xi32>
    %179 = arith.extui %178 : vector<16x64xi1> to vector<16x64xi32>
    %180 = arith.sitofp %179 : vector<16x64xi32> to vector<16x64xf32>
    %c0_57 = arith.constant 0 : index
    %c0_58 = arith.constant 0 : index
    %c0_59 = arith.constant 0 : index
    %181 = vector.load %arg10[%c0_57, %c0_58, %c0_59] : memref<2x64x32xf32, #tpu.memory_space<vmem>>, vector<1x64x32xf32>
    %182 = vector.shape_cast %181 : vector<1x64x32xf32> to vector<64x32xf32>
    %cst_60 = arith.constant dense<0.000000e+00> : vector<16x32xf32>
    %183 = tpu.matmul %180, %182, %cst_60 {dimension_numbers = #tpu.dot_dimension_numbers<[1], [0], [0], [1], [0, 0, 1, 1], [], []>} : vector<16x64xf32>, vector<64x32xf32>, vector<16x32xf32> -> vector<16x32xf32>
    %184 = arith.addf %0, %183 : vector<16x32xf32>
    %cst_61 = arith.constant 0.000000e+00 : f32
    %185 = vector.broadcast %cst_61 : f32 to vector<1x32xf32>
    %186 = vector.extract_strided_slice %184 {offsets = [0, 0], sizes = [15, 32], strides = [1, 1]} : vector<16x32xf32> to vector<15x32xf32>
    %187 = tpu.concatenate %185, %186 in 0 : vector<1x32xf32>, vector<15x32xf32> -> vector<16x32xf32>
    %cst_62 = arith.constant 0.000000e+00 : f32
    %188 = vector.shape_cast %5 : vector<16x1xi1> to vector<16x1xi1>
    %189 = vector.broadcast %188 : vector<16x1xi1> to vector<16x32xi1>
    %190 = vector.broadcast %cst_62 : f32 to vector<16x32xf32>
    %191 = arith.select %189, %190, %187 : vector<16x32xi1>, vector<16x32xf32>
    %192 = vector.extract_strided_slice %184 {offsets = [1, 0], sizes = [15, 32], strides = [1, 1]} : vector<16x32xf32> to vector<15x32xf32>
    %193 = tpu.concatenate %192, %185 in 0 : vector<15x32xf32>, vector<1x32xf32> -> vector<16x32xf32>
    %cst_63 = arith.constant 0.000000e+00 : f32
    %194 = vector.shape_cast %7 : vector<16x1xi1> to vector<16x1xi1>
    %195 = vector.broadcast %194 : vector<16x1xi1> to vector<16x32xi1>
    %196 = vector.broadcast %cst_63 : f32 to vector<16x32xf32>
    %197 = arith.select %195, %196, %193 : vector<16x32xi1>, vector<16x32xf32>
    %198 = tpu.concatenate %191, %184, %197 in 1 : vector<16x32xf32>, vector<16x32xf32>, vector<16x32xf32> -> vector<16x96xf32>
    %c0_64 = arith.constant 0 : index
    %c0_65 = arith.constant 0 : index
    %199 = vector.load %arg6[%c0_64, %c0_65] : memref<96x32xf32, #tpu.memory_space<vmem>>, vector<96x32xf32>
    %cst_66 = arith.constant dense<0.000000e+00> : vector<16x32xf32>
    %200 = tpu.matmul %198, %199, %cst_66 {dimension_numbers = #tpu.dot_dimension_numbers<[1], [0], [0], [1], [0, 0, 1, 1], [], []>} : vector<16x96xf32>, vector<96x32xf32>, vector<16x32xf32> -> vector<16x32xf32>
    %c0_67 = arith.constant 0 : index
    %c0_68 = arith.constant 0 : index
    %201 = vector.load %arg8[%c0_67, %c0_68] : memref<8x32xf32, #tpu.memory_space<vmem>>, vector<1x32xf32>
    %202 = vector.broadcast %201 : vector<1x32xf32> to vector<16x32xf32>
    %203 = arith.addf %200, %202 : vector<16x32xf32>
    %cst_69 = arith.constant 0.000000e+00 : f32
    %204 = vector.broadcast %cst_69 : f32 to vector<16x32xf32>
    %205 = arith.maximumf %203, %204 : vector<16x32xf32>
    %c1_70 = arith.constant 1 : index
    %c0_71 = arith.constant 0 : index
    %206 = vector.load %arg8[%c1_70, %c0_71] : memref<8x32xf32, #tpu.memory_space<vmem>>, vector<1x32xf32>
    %c2_72 = arith.constant 2 : index
    %c0_73 = arith.constant 0 : index
    %207 = vector.load %arg8[%c2_72, %c0_73] : memref<8x32xf32, #tpu.memory_space<vmem>>, vector<1x32xf32>
    %cst_74 = arith.constant dense<0.000000e+00> : vector<16xf32>
    %208 = vector.multi_reduction <add>, %205, %cst_74 [1] : vector<16x32xf32> to vector<16xf32>
    %209 = vector.shape_cast %208 : vector<16xf32> to vector<16x1xf32>
    %cst_75 = arith.constant 3.200000e+01 : f32
    %210 = vector.broadcast %cst_75 : f32 to vector<16x1xf32>
    %211 = arith.divf %209, %210 : vector<16x1xf32>
    %212 = vector.broadcast %211 : vector<16x1xf32> to vector<16x32xf32>
    %213 = arith.subf %205, %212 : vector<16x32xf32>
    %214 = arith.mulf %213, %213 : vector<16x32xf32>
    %cst_76 = arith.constant dense<0.000000e+00> : vector<16xf32>
    %215 = vector.multi_reduction <add>, %214, %cst_76 [1] : vector<16x32xf32> to vector<16xf32>
    %216 = vector.shape_cast %215 : vector<16xf32> to vector<16x1xf32>
    %cst_77 = arith.constant 3.200000e+01 : f32
    %217 = vector.broadcast %cst_77 : f32 to vector<16x1xf32>
    %218 = arith.divf %216, %217 : vector<16x1xf32>
    %219 = vector.broadcast %211 : vector<16x1xf32> to vector<16x32xf32>
    %220 = arith.subf %205, %219 : vector<16x32xf32>
    %cst_78 = arith.constant 9.99999974E-6 : f32
    %221 = vector.broadcast %cst_78 : f32 to vector<16x1xf32>
    %222 = arith.addf %218, %221 : vector<16x1xf32>
    %223 = math.rsqrt %222 : vector<16x1xf32>
    %224 = vector.broadcast %223 : vector<16x1xf32> to vector<16x32xf32>
    %225 = arith.mulf %220, %224 : vector<16x32xf32>
    %226 = vector.broadcast %206 : vector<1x32xf32> to vector<16x32xf32>
    %227 = arith.mulf %225, %226 : vector<16x32xf32>
    %228 = vector.broadcast %207 : vector<1x32xf32> to vector<16x32xf32>
    %229 = arith.addf %227, %228 : vector<16x32xf32>
    %cst_79 = arith.constant 0.000000e+00 : f32
    %230 = vector.broadcast %cst_79 : f32 to vector<1x32xf32>
    %231 = vector.extract_strided_slice %229 {offsets = [0, 0], sizes = [15, 32], strides = [1, 1]} : vector<16x32xf32> to vector<15x32xf32>
    %232 = tpu.concatenate %230, %231 in 0 : vector<1x32xf32>, vector<15x32xf32> -> vector<16x32xf32>
    %cst_80 = arith.constant 0.000000e+00 : f32
    %233 = vector.shape_cast %5 : vector<16x1xi1> to vector<16x1xi1>
    %234 = vector.broadcast %233 : vector<16x1xi1> to vector<16x32xi1>
    %235 = vector.broadcast %cst_80 : f32 to vector<16x32xf32>
    %236 = arith.select %234, %235, %232 : vector<16x32xi1>, vector<16x32xf32>
    %237 = vector.extract_strided_slice %229 {offsets = [1, 0], sizes = [15, 32], strides = [1, 1]} : vector<16x32xf32> to vector<15x32xf32>
    %238 = tpu.concatenate %237, %230 in 0 : vector<15x32xf32>, vector<1x32xf32> -> vector<16x32xf32>
    %cst_81 = arith.constant 0.000000e+00 : f32
    %239 = vector.shape_cast %7 : vector<16x1xi1> to vector<16x1xi1>
    %240 = vector.broadcast %239 : vector<16x1xi1> to vector<16x32xi1>
    %241 = vector.broadcast %cst_81 : f32 to vector<16x32xf32>
    %242 = arith.select %240, %241, %238 : vector<16x32xi1>, vector<16x32xf32>
    %243 = tpu.concatenate %236, %229, %242 in 1 : vector<16x32xf32>, vector<16x32xf32>, vector<16x32xf32> -> vector<16x96xf32>
    %c0_82 = arith.constant 0 : index
    %c0_83 = arith.constant 0 : index
    %244 = vector.load %arg7[%c0_82, %c0_83] : memref<96x32xf32, #tpu.memory_space<vmem>>, vector<96x32xf32>
    %cst_84 = arith.constant dense<0.000000e+00> : vector<16x32xf32>
    %245 = tpu.matmul %243, %244, %cst_84 {dimension_numbers = #tpu.dot_dimension_numbers<[1], [0], [0], [1], [0, 0, 1, 1], [], []>} : vector<16x96xf32>, vector<96x32xf32>, vector<16x32xf32> -> vector<16x32xf32>
    %c3_85 = arith.constant 3 : index
    %c0_86 = arith.constant 0 : index
    %246 = vector.load %arg8[%c3_85, %c0_86] : memref<8x32xf32, #tpu.memory_space<vmem>>, vector<1x32xf32>
    %247 = vector.broadcast %246 : vector<1x32xf32> to vector<16x32xf32>
    %248 = arith.addf %245, %247 : vector<16x32xf32>
    %cst_87 = arith.constant 0.000000e+00 : f32
    %249 = vector.broadcast %cst_87 : f32 to vector<16x32xf32>
    %250 = arith.maximumf %248, %249 : vector<16x32xf32>
    %c4_88 = arith.constant 4 : index
    %c0_89 = arith.constant 0 : index
    %251 = vector.load %arg8[%c4_88, %c0_89] : memref<8x32xf32, #tpu.memory_space<vmem>>, vector<1x32xf32>
    %c5_90 = arith.constant 5 : index
    %c0_91 = arith.constant 0 : index
    %252 = vector.load %arg8[%c5_90, %c0_91] : memref<8x32xf32, #tpu.memory_space<vmem>>, vector<1x32xf32>
    %cst_92 = arith.constant dense<0.000000e+00> : vector<16xf32>
    %253 = vector.multi_reduction <add>, %250, %cst_92 [1] : vector<16x32xf32> to vector<16xf32>
    %254 = vector.shape_cast %253 : vector<16xf32> to vector<16x1xf32>
    %cst_93 = arith.constant 3.200000e+01 : f32
    %255 = vector.broadcast %cst_93 : f32 to vector<16x1xf32>
    %256 = arith.divf %254, %255 : vector<16x1xf32>
    %257 = vector.broadcast %256 : vector<16x1xf32> to vector<16x32xf32>
    %258 = arith.subf %250, %257 : vector<16x32xf32>
    %259 = arith.mulf %258, %258 : vector<16x32xf32>
    %cst_94 = arith.constant dense<0.000000e+00> : vector<16xf32>
    %260 = vector.multi_reduction <add>, %259, %cst_94 [1] : vector<16x32xf32> to vector<16xf32>
    %261 = vector.shape_cast %260 : vector<16xf32> to vector<16x1xf32>
    %cst_95 = arith.constant 3.200000e+01 : f32
    %262 = vector.broadcast %cst_95 : f32 to vector<16x1xf32>
    %263 = arith.divf %261, %262 : vector<16x1xf32>
    %264 = vector.broadcast %256 : vector<16x1xf32> to vector<16x32xf32>
    %265 = arith.subf %250, %264 : vector<16x32xf32>
    %cst_96 = arith.constant 9.99999974E-6 : f32
    %266 = vector.broadcast %cst_96 : f32 to vector<16x1xf32>
    %267 = arith.addf %263, %266 : vector<16x1xf32>
    %268 = math.rsqrt %267 : vector<16x1xf32>
    %269 = vector.broadcast %268 : vector<16x1xf32> to vector<16x32xf32>
    %270 = arith.mulf %265, %269 : vector<16x32xf32>
    %271 = vector.broadcast %251 : vector<1x32xf32> to vector<16x32xf32>
    %272 = arith.mulf %270, %271 : vector<16x32xf32>
    %273 = vector.broadcast %252 : vector<1x32xf32> to vector<16x32xf32>
    %274 = arith.addf %272, %273 : vector<16x32xf32>
    %c6_97 = arith.constant 6 : index
    %c0_98 = arith.constant 0 : index
    %275 = vector.load %arg8[%c6_97, %c0_98] : memref<8x32xf32, #tpu.memory_space<vmem>>, vector<1x32xf32>
    %276 = vector.broadcast %275 : vector<1x32xf32> to vector<16x32xf32>
    %277 = arith.mulf %274, %276 : vector<16x32xf32>
    %cst_99 = arith.constant dense<0.000000e+00> : vector<16xf32>
    %278 = vector.multi_reduction <add>, %277, %cst_99 [1] : vector<16x32xf32> to vector<16xf32>
    %279 = vector.shape_cast %278 : vector<16xf32> to vector<16x1xf32>
    %c7_100 = arith.constant 7 : index
    %c0_101 = arith.constant 0 : index
    %280 = vector.load %arg8[%c7_100, %c0_101] : memref<8x32xf32, #tpu.memory_space<vmem>>, vector<1x1xf32>
    %281 = vector.broadcast %280 : vector<1x1xf32> to vector<16x1xf32>
    %282 = arith.addf %279, %281 : vector<16x1xf32>
    %cst_102 = arith.constant 1.000000e+00 : f32
    %283 = vector.broadcast %cst_102 : f32 to vector<16x1xf32>
    %284 = arith.mulf %282, %283 : vector<16x1xf32>
    %c1_103 = arith.constant 1 : index
    %c0_104 = arith.constant 0 : index
    %285 = vector.load %arg9[%c1_103, %c0_104] : memref<2x128xf32, #tpu.memory_space<vmem>>, vector<1x128xf32>
    %286 = vector.broadcast %284 : vector<16x1xf32> to vector<16x128xf32>
    %287 = vector.broadcast %285 : vector<1x128xf32> to vector<16x128xf32>
    %288 = arith.cmpf ogt, %286, %287 : vector<16x128xf32>
    %289 = arith.extui %288 : vector<16x128xi1> to vector<16x128xi32>
    %cst_105 = arith.constant dense<0> : vector<16xi32>
    %290 = vector.multi_reduction <add>, %289, %cst_105 [1] : vector<16x128xi32> to vector<16xi32>
    %291 = vector.shape_cast %290 : vector<16xi32> to vector<16x1xi32>
    %292 = tpu.iota {dimensions = array<i32: 1>} : vector<16x64xi32>
    %293 = vector.broadcast %291 : vector<16x1xi32> to vector<16x64xi32>
    %294 = arith.cmpi eq, %292, %293 : vector<16x64xi32>
    %295 = arith.extui %294 : vector<16x64xi1> to vector<16x64xi32>
    %296 = arith.sitofp %295 : vector<16x64xi32> to vector<16x64xf32>
    %c1_106 = arith.constant 1 : index
    %c0_107 = arith.constant 0 : index
    %c0_108 = arith.constant 0 : index
    %297 = vector.load %arg10[%c1_106, %c0_107, %c0_108] : memref<2x64x32xf32, #tpu.memory_space<vmem>>, vector<1x64x32xf32>
    %298 = vector.shape_cast %297 : vector<1x64x32xf32> to vector<64x32xf32>
    %cst_109 = arith.constant dense<0.000000e+00> : vector<16x32xf32>
    %299 = tpu.matmul %296, %298, %cst_109 {dimension_numbers = #tpu.dot_dimension_numbers<[1], [0], [0], [1], [0, 0, 1, 1], [], []>} : vector<16x64xf32>, vector<64x32xf32>, vector<16x32xf32> -> vector<16x32xf32>
    %300 = arith.addf %184, %299 : vector<16x32xf32>
    %cst_110 = arith.constant 0.000000e+00 : f32
    %301 = vector.broadcast %cst_110 : f32 to vector<16x4xf32>
    %302 = tpu.concatenate %148, %156, %284, %168, %301 in 1 : vector<16x1xf32>, vector<16x1xf32>, vector<16x1xf32>, vector<16x1xf32>, vector<16x4xf32> -> vector<16x8xf32>
    %c0_111 = arith.constant 0 : index
    %c0_112 = arith.constant 0 : index
    %303 = vector.load %arg12[%c0_111, %c0_112] : memref<16x8xf32, #tpu.memory_space<vmem>>, vector<16x8xf32>
    tpu.vector_store %arg12[%c0_111, %c0_112], %302 {strides = array<i32>} : memref<16x8xf32, #tpu.memory_space<vmem>>, vector<16x8xf32>,
    %304 = vector.extract_strided_slice %168 {offsets = [0, 0], sizes = [8, 1], strides = [1, 1]} : vector<16x1xf32> to vector<8x1xf32>
    %305 = vector.extract_strided_slice %300 {offsets = [0, 0], sizes = [8, 32], strides = [1, 1]} : vector<16x32xf32> to vector<8x32xf32>
    %cst_113 = arith.constant 0.000000e+00 : f32
    %306 = vector.broadcast %cst_113 : f32 to vector<1x1xf32>
    %307 = vector.extract_strided_slice %304 {offsets = [0, 0], sizes = [7, 1], strides = [1, 1]} : vector<8x1xf32> to vector<7x1xf32>
    %308 = tpu.concatenate %306, %307 in 0 : vector<1x1xf32>, vector<7x1xf32> -> vector<8x1xf32>
    %309 = arith.addf %304, %308 : vector<8x1xf32>
    %cst_114 = arith.constant 0.000000e+00 : f32
    %310 = vector.broadcast %cst_114 : f32 to vector<2x1xf32>
    %311 = vector.extract_strided_slice %309 {offsets = [0, 0], sizes = [6, 1], strides = [1, 1]} : vector<8x1xf32> to vector<6x1xf32>
    %312 = tpu.concatenate %310, %311 in 0 : vector<2x1xf32>, vector<6x1xf32> -> vector<8x1xf32>
    %313 = arith.addf %309, %312 : vector<8x1xf32>
    %cst_115 = arith.constant 0.000000e+00 : f32
    %314 = vector.broadcast %cst_115 : f32 to vector<4x1xf32>
    %315 = vector.extract_strided_slice %313 {offsets = [0, 0], sizes = [4, 1], strides = [1, 1]} : vector<8x1xf32> to vector<4x1xf32>
    %316 = tpu.concatenate %314, %315 in 0 : vector<4x1xf32>, vector<4x1xf32> -> vector<8x1xf32>
    %317 = arith.addf %313, %316 : vector<8x1xf32>
    %318 = arith.subf %317, %304 : vector<8x1xf32>
    %319 = arith.fptosi %318 : vector<8x1xf32> to vector<8x1xi32>
    %320 = arith.fptosi %317 : vector<8x1xf32> to vector<8x1xi32>
    %321 = tpu.iota {dimensions = array<i32: 1>} : vector<8x32xi32>
    %322 = vector.broadcast %319 : vector<8x1xi32> to vector<8x32xi32>
    %323 = arith.cmpi sge, %321, %322 : vector<8x32xi32>
    %324 = vector.broadcast %320 : vector<8x1xi32> to vector<8x32xi32>
    %325 = arith.cmpi slt, %321, %324 : vector<8x32xi32>
    %326 = arith.andi %323, %325 : vector<8x32xi1>
    %327 = arith.extui %326 : vector<8x32xi1> to vector<8x32xi32>
    %328 = arith.sitofp %327 : vector<8x32xi32> to vector<8x32xf32>
    %cst_116 = arith.constant dense<0.000000e+00> : vector<32x32xf32>
    %329 = tpu.matmul %328, %305, %cst_116 {dimension_numbers = #tpu.dot_dimension_numbers<[0], [0], [1], [1], [0, 1, 1, 1], [], []>} : vector<8x32xf32>, vector<8x32xf32>, vector<32x32xf32> -> vector<32x32xf32>
    %c0_117 = arith.constant 0 : index
    %c0_118 = arith.constant 0 : index
    %c0_119 = arith.constant 0 : index
    %330 = vector.load %arg11[%c0_117, %c0_118, %c0_119] : memref<2x32x32xf32, #tpu.memory_space<vmem>>, vector<1x32x32xf32>
    %331 = vector.shape_cast %330 : vector<1x32x32xf32> to vector<32x32xf32>
    %332 = vector.shape_cast %329 : vector<32x32xf32> to vector<1x32x32xf32>
    tpu.vector_store %arg11[%c0_117, %c0_118, %c0_119], %332 {strides = array<i32>} : memref<2x32x32xf32, #tpu.memory_space<vmem>>, vector<1x32x32xf32>,
    %333 = vector.extract_strided_slice %168 {offsets = [8, 0], sizes = [8, 1], strides = [1, 1]} : vector<16x1xf32> to vector<8x1xf32>
    %334 = vector.extract_strided_slice %300 {offsets = [8, 0], sizes = [8, 32], strides = [1, 1]} : vector<16x32xf32> to vector<8x32xf32>
    %cst_120 = arith.constant 0.000000e+00 : f32
    %335 = vector.broadcast %cst_120 : f32 to vector<1x1xf32>
    %336 = vector.extract_strided_slice %333 {offsets = [0, 0], sizes = [7, 1], strides = [1, 1]} : vector<8x1xf32> to vector<7x1xf32>
    %337 = tpu.concatenate %335, %336 in 0 : vector<1x1xf32>, vector<7x1xf32> -> vector<8x1xf32>
    %338 = arith.addf %333, %337 : vector<8x1xf32>
    %cst_121 = arith.constant 0.000000e+00 : f32
    %339 = vector.broadcast %cst_121 : f32 to vector<2x1xf32>
    %340 = vector.extract_strided_slice %338 {offsets = [0, 0], sizes = [6, 1], strides = [1, 1]} : vector<8x1xf32> to vector<6x1xf32>
    %341 = tpu.concatenate %339, %340 in 0 : vector<2x1xf32>, vector<6x1xf32> -> vector<8x1xf32>
    %342 = arith.addf %338, %341 : vector<8x1xf32>
    %cst_122 = arith.constant 0.000000e+00 : f32
    %343 = vector.broadcast %cst_122 : f32 to vector<4x1xf32>
    %344 = vector.extract_strided_slice %342 {offsets = [0, 0], sizes = [4, 1], strides = [1, 1]} : vector<8x1xf32> to vector<4x1xf32>
    %345 = tpu.concatenate %343, %344 in 0 : vector<4x1xf32>, vector<4x1xf32> -> vector<8x1xf32>
    %346 = arith.addf %342, %345 : vector<8x1xf32>
    %347 = arith.subf %346, %333 : vector<8x1xf32>
    %348 = arith.fptosi %347 : vector<8x1xf32> to vector<8x1xi32>
    %349 = arith.fptosi %346 : vector<8x1xf32> to vector<8x1xi32>
    %350 = tpu.iota {dimensions = array<i32: 1>} : vector<8x32xi32>
    %351 = vector.broadcast %348 : vector<8x1xi32> to vector<8x32xi32>
    %352 = arith.cmpi sge, %350, %351 : vector<8x32xi32>
    %353 = vector.broadcast %349 : vector<8x1xi32> to vector<8x32xi32>
    %354 = arith.cmpi slt, %350, %353 : vector<8x32xi32>
    %355 = arith.andi %352, %354 : vector<8x32xi1>
    %356 = arith.extui %355 : vector<8x32xi1> to vector<8x32xi32>
    %357 = arith.sitofp %356 : vector<8x32xi32> to vector<8x32xf32>
    %cst_123 = arith.constant dense<0.000000e+00> : vector<32x32xf32>
    %358 = tpu.matmul %357, %334, %cst_123 {dimension_numbers = #tpu.dot_dimension_numbers<[0], [0], [1], [1], [0, 1, 1, 1], [], []>} : vector<8x32xf32>, vector<8x32xf32>, vector<32x32xf32> -> vector<32x32xf32>
    %c1_124 = arith.constant 1 : index
    %c0_125 = arith.constant 0 : index
    %c0_126 = arith.constant 0 : index
    %359 = vector.load %arg11[%c1_124, %c0_125, %c0_126] : memref<2x32x32xf32, #tpu.memory_space<vmem>>, vector<1x32x32xf32>
    %360 = vector.shape_cast %359 : vector<1x32x32xf32> to vector<32x32xf32>
    %361 = vector.shape_cast %358 : vector<32x32xf32> to vector<1x32x32xf32>
    tpu.vector_store %arg11[%c1_124, %c0_125, %c0_126], %361 {strides = array<i32>} : memref<2x32x32xf32, #tpu.memory_space<vmem>>, vector<1x32x32xf32>,
    return
  }
  func.func @transform_0(%arg0: i32) -> (i32, i32) {
    %c0_i32 = arith.constant 0 : i32
    %c0_i32_0 = arith.constant 0 : i32
    return %arg0, %c0_i32 : i32, i32
  }
  func.func @transform_1(%arg0: i32) -> (i32, i32) {
    %c0_i32 = arith.constant 0 : i32
    %c0_i32_0 = arith.constant 0 : i32
    return %arg0, %c0_i32 : i32, i32
  }
  func.func @transform_2(%arg0: i32) -> (i32, i32) {
    %c0_i32 = arith.constant 0 : i32
    %c0_i32_0 = arith.constant 0 : i32
    %c0_i32_1 = arith.constant 0 : i32
    return %c0_i32, %c0_i32_0 : i32, i32
  }
  func.func @transform_3(%arg0: i32) -> (i32, i32) {
    %c0_i32 = arith.constant 0 : i32
    %c0_i32_0 = arith.constant 0 : i32
    %c0_i32_1 = arith.constant 0 : i32
    return %c0_i32, %c0_i32_0 : i32, i32
  }
  func.func @transform_4(%arg0: i32) -> (i32, i32) {
    %c0_i32 = arith.constant 0 : i32
    %c0_i32_0 = arith.constant 0 : i32
    %c0_i32_1 = arith.constant 0 : i32
    return %c0_i32, %c0_i32_0 : i32, i32
  }
  func.func @transform_5(%arg0: i32) -> (i32, i32) {
    %c0_i32 = arith.constant 0 : i32
    %c0_i32_0 = arith.constant 0 : i32
    %c0_i32_1 = arith.constant 0 : i32
    return %c0_i32, %c0_i32_0 : i32, i32
  }
  func.func @transform_6(%arg0: i32) -> (i32, i32) {
    %c0_i32 = arith.constant 0 : i32
    %c0_i32_0 = arith.constant 0 : i32
    %c0_i32_1 = arith.constant 0 : i32
    return %c0_i32, %c0_i32_0 : i32, i32
  }
  func.func @transform_7(%arg0: i32) -> (i32, i32) {
    %c0_i32 = arith.constant 0 : i32
    %c0_i32_0 = arith.constant 0 : i32
    %c0_i32_1 = arith.constant 0 : i32
    return %c0_i32, %c0_i32_0 : i32, i32
  }
  func.func @transform_8(%arg0: i32) -> (i32, i32) {
    %c0_i32 = arith.constant 0 : i32
    %c0_i32_0 = arith.constant 0 : i32
    %c0_i32_1 = arith.constant 0 : i32
    return %c0_i32, %c0_i32_0 : i32, i32
  }
  func.func @transform_9(%arg0: i32) -> (i32, i32, i32) {
    %c0_i32 = arith.constant 0 : i32
    %c0_i32_0 = arith.constant 0 : i32
    %c0_i32_1 = arith.constant 0 : i32
    %c0_i32_2 = arith.constant 0 : i32
    return %c0_i32, %c0_i32_0, %c0_i32_1 : i32, i32, i32
  }
  func.func @transform_10(%arg0: i32) -> (i32, i32, i32) {
    %c0_i32 = arith.constant 0 : i32
    %c0_i32_0 = arith.constant 0 : i32
    %c0_i32_1 = arith.constant 0 : i32
    return %arg0, %c0_i32, %c0_i32_0 : i32, i32, i32
  }
  func.func @transform_11(%arg0: i32) -> (i32, i32) {
    %c0_i32 = arith.constant 0 : i32
    %c0_i32_0 = arith.constant 0 : i32
    return %arg0, %c0_i32 : i32, i32
  }
}

</mosaic_0001>

<llo_original>
// kernel: tpu_custom_call.1
$region0: #{tpu_custom_call.1}
  #allocation0 [shape = 'u32[]', space=smem, size = 0x4, offset = 0x4, fixed_abs, tag = 'smem constant byte address 0x4 - core index']
  #allocation1 [shape = 'u32[72,128]{1,0:T(1,128)}', space=vmem, size = 0x9000, scoped, tag = 'internal scratch']
  %s0 = inlined_call_operand.vmem [shape: f32[32,32], index: 0, kind: input, shape index: {}]
  %s1 = inlined_call_operand.vmem [shape: f32[32,1], index: 1, kind: input, shape index: {}]
  %s2 = inlined_call_operand.vmem [shape: f32[96,64], index: 2, kind: input, shape index: {}]
  %s3 = inlined_call_operand.vmem [shape: f32[192,64], index: 3, kind: input, shape index: {}]
  %s4 = inlined_call_operand.vmem [shape: f32[8,64], index: 4, kind: input, shape index: {}]
  %s5 = inlined_call_operand.vmem [shape: f32[96,32], index: 5, kind: input, shape index: {}]
  %s6 = inlined_call_operand.vmem [shape: f32[96,32], index: 6, kind: input, shape index: {}]
  %s7 = inlined_call_operand.vmem [shape: f32[8,32], index: 7, kind: input, shape index: {}]
  %s8 = inlined_call_operand.vmem [shape: f32[2,128], index: 8, kind: input, shape index: {}]
  %s9 = inlined_call_operand.vmem [shape: f32[2,64,32], index: 9, kind: input, shape index: {}]
  %s10 = inlined_call_operand.hbm [shape: f32[4,32,32], index: 10, kind: output, shape index: {0}]
  %s11 = inlined_call_operand.vmem [shape: f32[32,8], index: 11, kind: output, shape index: {1}]
  %12 = xla_tuple %s10, %s11
  %s13 = sld [smem:[#allocation0]]
  $region81: #{tpu_custom_call.1} parent=0
    _
  %s15 = ssub.s32 1, %s13
  %s16 = scalar_select 0, %s15, %s13
  $region1: #{tpu_custom_call.1} parent=0
    #allocation2 [shape = 'u8[65536]{0}', space=vmem, size = 0x10000, scoped, tag = 'output window, operand 0']
    #allocation3 [shape = 's32[2]{0}', space=sflag, size = 0x8, scoped, tag = 'scoped memory for tpu_custom_call.1']
    %17 = vsyncpa [#allocation3], 0
    %s18 = scalar_lea.sflag [#allocation3], 1
    %19 = vsyncpa %s18, 0
    loop: start=0, step=1, limit=4
    $region2: #{tpu_custom_call.1} parent=1 // loop_pre_header
      _
    $region3: #{tpu_custom_call.1} parent=1 // loop_header
      %s21 = sphi 0, %s25
      %p22 = scmp.ge.s32.totalorder %s21, 4
      %s31 = sphi 0, %s33
      %s34 = sphi 0, %s31
      %s35 = sphi 0, %s34
      %s51 = sphi 0, %s35
      %s57 = sphi 0, %s59
      %s60 = sphi 0, %s57
      %s61 = sphi 0, %s60
      %s77 = sphi 0, %s61
      %s81 = sphi 0, %s81
      %s83 = sphi 0, %s81
      %s84 = sphi 0, %s83
      %s98 = sphi 0, %s84
      %s102 = sphi 0, %s102
      %s104 = sphi 0, %s102
      %s105 = sphi 0, %s104
      %s119 = sphi 0, %s105
      %s123 = sphi 0, %s123
      %s125 = sphi 0, %s123
      %s126 = sphi 0, %s125
      %s140 = sphi 0, %s126
      %s144 = sphi 0, %s144
      %s146 = sphi 0, %s144
      %s147 = sphi 0, %s146
      %s161 = sphi 0, %s147
      %s165 = sphi 0, %s165
      %s167 = sphi 0, %s165
      %s168 = sphi 0, %s167
      %s182 = sphi 0, %s168
      %s186 = sphi 0, %s186
      %s188 = sphi 0, %s186
      %s189 = sphi 0, %s188
      %s203 = sphi 0, %s189
      %s207 = sphi 0, %s207
      %s209 = sphi 0, %s207
      %s210 = sphi 0, %s209
      %s224 = sphi 0, %s210
      %s228 = sphi 0, %s228
      %s230 = sphi 0, %s228
      %s231 = sphi 0, %s230
      %s245 = sphi 0, %s231
      %s251 = sphi 0, %s253
      %s254 = sphi 0, %s251
      %s255 = sphi 0, %s254
      %s271 = sphi 0, %s255
      %s277 = sphi 0, %s279
      %s280 = sphi 0, %s277
      %s281 = sphi 0, %s280
      %s297 = sphi 0, %s281
    $region4: #{tpu_custom_call.1} parent=1 // loop_header_branch
      %24 = sbr.rel (%p22) target = $region8
    $region5: #{tpu_custom_call.1} parent=1 // loop_body
      %s26 = ssub.s32 %s21, 1
      %s27 = ssub.s32 %s21, 2
      %s28 = sadd.s32 %s21, 1
      %s29 = ssub.s32 %s21, %s28
      %p30 = scmp.eq.s32.totalorder %s29, 0
      %s32 = sadd.s32 %s31, 1
      %s33 = scalar_select %p30, %s31, %s32
      %p36 = pneg %p30
      %p37 = scmp.eq.s32.totalorder %s21, 1
      %p38 = por %p36, %p37
      %p39 = scmp.ne.s32.totalorder %s31, %s34
      %p40 = scmp.eq.s32.totalorder %s21, 0
      %p41 = por %p39, %p40
      %p42 = scmp.ne.s32.totalorder %s31, %s34
      %p43 = scmp.eq.s32.totalorder %s26, 1
      %p44 = por %p42, %p43
      %p45 = scmp.ne.s32.totalorder %s34, %s35
      %p46 = scmp.eq.s32.totalorder %s26, 0
      %p47 = por %p45, %p46
      %p48 = scmp.ne.s32.totalorder %s34, %s35
      %p49 = scmp.eq.s32.totalorder %s27, 1
      %p50 = por %p48, %p49
      %p52 = scmp.ne.s32.totalorder %s35, %s51
      %p53 = scmp.eq.s32.totalorder %s27, 0
      %p54 = por %p52, %p53
      %s55 = ssub.s32 %s21, %s28
      %p56 = scmp.eq.s32.totalorder %s55, 0
      %s58 = sadd.s32 %s57, 1
      %s59 = scalar_select %p56, %s57, %s58
      %p62 = pneg %p56
      %p63 = scmp.eq.s32.totalorder %s21, 1
      %p64 = por %p62, %p63
      %p65 = scmp.ne.s32.totalorder %s57, %s60
      %p66 = scmp.eq.s32.totalorder %s21, 0
      %p67 = por %p65, %p66
      %p68 = scmp.ne.s32.totalorder %s57, %s60
      %p69 = scmp.eq.s32.totalorder %s26, 1
      %p70 = por %p68, %p69
      %p71 = scmp.ne.s32.totalorder %s60, %s61
      %p72 = scmp.eq.s32.totalorder %s26, 0
      %p73 = por %p71, %p72
      %p74 = scmp.ne.s32.totalorder %s60, %s61
      %p75 = scmp.eq.s32.totalorder %s27, 1
      %p76 = por %p74, %p75
      %p78 = scmp.ne.s32.totalorder %s61, %s77
      %p79 = scmp.eq.s32.totalorder %s27, 0
      %p80 = por %p78, %p79
      %s82 = sadd.s32 %s81, 1
      %p85 = scmp.eq.s32.totalorder %s21, 1
      %p86 = scmp.ne.s32.totalorder %s81, %s83
      %p87 = scmp.eq.s32.totalorder %s21, 0
      %p88 = por %p86, %p87
      %p89 = scmp.ne.s32.totalorder %s81, %s83
      %p90 = scmp.eq.s32.totalorder %s26, 1
      %p91 = por %p89, %p90
      %p92 = scmp.ne.s32.totalorder %s83, %s84
      %p93 = scmp.eq.s32.totalorder %s26, 0
      %p94 = por %p92, %p93
      %p95 = scmp.ne.s32.totalorder %s83, %s84
      %p96 = scmp.eq.s32.totalorder %s27, 1
      %p97 = por %p95, %p96
      %p99 = scmp.ne.s32.totalorder %s84, %s98
      %p100 = scmp.eq.s32.totalorder %s27, 0
      %p101 = por %p99, %p100
      %s103 = sadd.s32 %s102, 1
      %p106 = scmp.eq.s32.totalorder %s21, 1
      %p107 = scmp.ne.s32.totalorder %s102, %s104
      %p108 = scmp.eq.s32.totalorder %s21, 0
      %p109 = por %p107, %p108
      %p110 = scmp.ne.s32.totalorder %s102, %s104
      %p111 = scmp.eq.s32.totalorder %s26, 1
      %p112 = por %p110, %p111
      %p113 = scmp.ne.s32.totalorder %s104, %s105
      %p114 = scmp.eq.s32.totalorder %s26, 0
      %p115 = por %p113, %p114
      %p116 = scmp.ne.s32.totalorder %s104, %s105
      %p117 = scmp.eq.s32.totalorder %s27, 1
      %p118 = por %p116, %p117
      %p120 = scmp.ne.s32.totalorder %s105, %s119
      %p121 = scmp.eq.s32.totalorder %s27, 0
      %p122 = por %p120, %p121
      %s124 = sadd.s32 %s123, 1
      %p127 = scmp.eq.s32.totalorder %s21, 1
      %p128 = scmp.ne.s32.totalorder %s123, %s125
      %p129 = scmp.eq.s32.totalorder %s21, 0
      %p130 = por %p128, %p129
      %p131 = scmp.ne.s32.totalorder %s123, %s125
      %p132 = scmp.eq.s32.totalorder %s26, 1
      %p133 = por %p131, %p132
      %p134 = scmp.ne.s32.totalorder %s125, %s126
      %p135 = scmp.eq.s32.totalorder %s26, 0
      %p136 = por %p134, %p135
      %p137 = scmp.ne.s32.totalorder %s125, %s126
      %p138 = scmp.eq.s32.totalorder %s27, 1
      %p139 = por %p137, %p138
      %p141 = scmp.ne.s32.totalorder %s126, %s140
      %p142 = scmp.eq.s32.totalorder %s27, 0
      %p143 = por %p141, %p142
      %s145 = sadd.s32 %s144, 1
      %p148 = scmp.eq.s32.totalorder %s21, 1
      %p149 = scmp.ne.s32.totalorder %s144, %s146
      %p150 = scmp.eq.s32.totalorder %s21, 0
      %p151 = por %p149, %p150
      %p152 = scmp.ne.s32.totalorder %s144, %s146
      %p153 = scmp.eq.s32.totalorder %s26, 1
      %p154 = por %p152, %p153
      %p155 = scmp.ne.s32.totalorder %s146, %s147
      %p156 = scmp.eq.s32.totalorder %s26, 0
      %p157 = por %p155, %p156
      %p158 = scmp.ne.s32.totalorder %s146, %s147
      %p159 = scmp.eq.s32.totalorder %s27, 1
      %p160 = por %p158, %p159
      %p162 = scmp.ne.s32.totalorder %s147, %s161
      %p163 = scmp.eq.s32.totalorder %s27, 0
      %p164 = por %p162, %p163
      %s166 = sadd.s32 %s165, 1
      %p169 = scmp.eq.s32.totalorder %s21, 1
      %p170 = scmp.ne.s32.totalorder %s165, %s167
      %p171 = scmp.eq.s32.totalorder %s21, 0
      %p172 = por %p170, %p171
      %p173 = scmp.ne.s32.totalorder %s165, %s167
      %p174 = scmp.eq.s32.totalorder %s26, 1
      %p175 = por %p173, %p174
      %p176 = scmp.ne.s32.totalorder %s167, %s168
      %p177 = scmp.eq.s32.totalorder %s26, 0
      %p178 = por %p176, %p177
      %p179 = scmp.ne.s32.totalorder %s167, %s168
      %p180 = scmp.eq.s32.totalorder %s27, 1
      %p181 = por %p179, %p180
      %p183 = scmp.ne.s32.totalorder %s168, %s182
      %p184 = scmp.eq.s32.totalorder %s27, 0
      %p185 = por %p183, %p184
      %s187 = sadd.s32 %s186, 1
      %p190 = scmp.eq.s32.totalorder %s21, 1
      %p191 = scmp.ne.s32.totalorder %s186, %s188
      %p192 = scmp.eq.s32.totalorder %s21, 0
      %p193 = por %p191, %p192
      %p194 = scmp.ne.s32.totalorder %s186, %s188
      %p195 = scmp.eq.s32.totalorder %s26, 1
      %p196 = por %p194, %p195
      %p197 = scmp.ne.s32.totalorder %s188, %s189
      %p198 = scmp.eq.s32.totalorder %s26, 0
      %p199 = por %p197, %p198
      %p200 = scmp.ne.s32.totalorder %s188, %s189
      %p201 = scmp.eq.s32.totalorder %s27, 1
      %p202 = por %p200, %p201
      %p204 = scmp.ne.s32.totalorder %s189, %s203
      %p205 = scmp.eq.s32.totalorder %s27, 0
      %p206 = por %p204, %p205
      %s208 = sadd.s32 %s207, 1
      %p211 = scmp.eq.s32.totalorder %s21, 1
      %p212 = scmp.ne.s32.totalorder %s207, %s209
      %p213 = scmp.eq.s32.totalorder %s21, 0
      %p214 = por %p212, %p213
      %p215 = scmp.ne.s32.totalorder %s207, %s209
      %p216 = scmp.eq.s32.totalorder %s26, 1
      %p217 = por %p215, %p216
      %p218 = scmp.ne.s32.totalorder %s209, %s210
      %p219 = scmp.eq.s32.totalorder %s26, 0
      %p220 = por %p218, %p219
      %p221 = scmp.ne.s32.totalorder %s209, %s210
      %p222 = scmp.eq.s32.totalorder %s27, 1
      %p223 = por %p221, %p222
      %p225 = scmp.ne.s32.totalorder %s210, %s224
      %p226 = scmp.eq.s32.totalorder %s27, 0
      %p227 = por %p225, %p226
      %s229 = sadd.s32 %s228, 1
      %p232 = scmp.eq.s32.totalorder %s21, 1
      %p233 = scmp.ne.s32.totalorder %s228, %s230
      %p234 = scmp.eq.s32.totalorder %s21, 0
      %p235 = por %p233, %p234
      %p236 = scmp.ne.s32.totalorder %s228, %s230
      %p237 = scmp.eq.s32.totalorder %s26, 1
      %p238 = por %p236, %p237
      %p239 = scmp.ne.s32.totalorder %s230, %s231
      %p240 = scmp.eq.s32.totalorder %s26, 0
      %p241 = por %p239, %p240
      %p242 = scmp.ne.s32.totalorder %s230, %s231
      %p243 = scmp.eq.s32.totalorder %s27, 1
      %p244 = por %p242, %p243
      %p246 = scmp.ne.s32.totalorder %s231, %s245
      %p247 = scmp.eq.s32.totalorder %s27, 0
      %p248 = por %p246, %p247
      %s249 = ssub.s32 %s21, %s28
      %p250 = scmp.eq.s32.totalorder %s249, 0
      %s252 = sadd.s32 %s251, 1
      %s253 = scalar_select %p250, %s251, %s252
      %p256 = pneg %p250
      %p257 = scmp.eq.s32.totalorder %s21, 1
      %p258 = por %p256, %p257
      %p259 = scmp.ne.s32.totalorder %s251, %s254
      %p260 = scmp.eq.s32.totalorder %s21, 0
      %p261 = por %p259, %p260
      %p262 = scmp.ne.s32.totalorder %s251, %s254
      %p263 = scmp.eq.s32.totalorder %s26, 1
      %p264 = por %p262, %p263
      %p265 = scmp.ne.s32.totalorder %s254, %s255
      %p266 = scmp.eq.s32.totalorder %s26, 0
      %p267 = por %p265, %p266
      %p268 = scmp.ne.s32.totalorder %s254, %s255
      %p269 = scmp.eq.s32.totalorder %s27, 1
      %p270 = por %p268, %p269
      %p272 = scmp.ne.s32.totalorder %s255, %s271
      %p273 = scmp.eq.s32.totalorder %s27, 0
      %p274 = por %p272, %p273
      %s275 = ssub.s32 %s21, %s28
      %p276 = scmp.eq.s32.totalorder %s275, 0
      %s278 = sadd.s32 %s277, 1
      %s279 = scalar_select %p276, %s277, %s278
      %p282 = pneg %p276
      %p283 = scmp.eq.s32.totalorder %s21, 1
      %p284 = por %p282, %p283
      %p285 = scmp.ne.s32.totalorder %s277, %s280
      %p286 = scmp.eq.s32.totalorder %s21, 0
      %p287 = por %p285, %p286
      %p288 = scmp.ne.s32.totalorder %s277, %s280
      %p289 = scmp.eq.s32.totalorder %s26, 1
      %p290 = por %p288, %p289
      %p291 = scmp.ne.s32.totalorder %s280, %s281
      %p292 = scmp.eq.s32.totalorder %s26, 0
      %p293 = por %p291, %p292
      %p294 = scmp.ne.s32.totalorder %s280, %s281
      %p295 = scmp.eq.s32.totalorder %s27, 1
      %p296 = por %p294, %p295
      %p298 = scmp.ne.s32.totalorder %s281, %s297
      %p299 = scmp.eq.s32.totalorder %s27, 0
      %p300 = por %p298, %p299
      %p301 = scmp.le.s32.totalorder 1, %s21
      %p302 = scmp.lt.s32.totalorder %s21, 3
      %p303 = pnand %p301, %p302
      %p304 = pneg %p303
      // Predicated region
      $region9: #{tpu_custom_call.1} parent=5 // pred_check
        _
      $region10: #{tpu_custom_call.1} parent=5 // pred_check_branch
        %306 = sbr.rel (%p303) target = $region12
      $region11: #{tpu_custom_call.1} parent=5 // pred_region
        %s307 = ssub.s32 %s21, 1
        // Predicated region
        $region13: #{tpu_custom_call.1} parent=11 // pred_check
          %p308 = pneg %p94
        $region14: #{tpu_custom_call.1} parent=11 // pred_check_branch
          %310 = sbr.rel (%p308) target = $region16
        $region15: #{tpu_custom_call.1} parent=11 // pred_region
          _
        $region16: #{tpu_custom_call.1} parent=11 // pred_fallthru
          _
        // Predicated region
        $region17: #{tpu_custom_call.1} parent=11 // pred_check
          %p311 = pneg %p115
        $region18: #{tpu_custom_call.1} parent=11 // pred_check_branch
          %313 = sbr.rel (%p311) target = $region20
        $region19: #{tpu_custom_call.1} parent=11 // pred_region
          _
        $region20: #{tpu_custom_call.1} parent=11 // pred_fallthru
          _
        // Predicated region
        $region21: #{tpu_custom_call.1} parent=11 // pred_check
          %p314 = pneg %p136
        $region22: #{tpu_custom_call.1} parent=11 // pred_check_branch
          %316 = sbr.rel (%p314) target = $region24
        $region23: #{tpu_custom_call.1} parent=11 // pred_region
          _
        $region24: #{tpu_custom_call.1} parent=11 // pred_fallthru
          _
        // Predicated region
        $region25: #{tpu_custom_call.1} parent=11 // pred_check
          %p317 = pneg %p157
        $region26: #{tpu_custom_call.1} parent=11 // pred_check_branch
          %319 = sbr.rel (%p317) target = $region28
        $region27: #{tpu_custom_call.1} parent=11 // pred_region
          _
        $region28: #{tpu_custom_call.1} parent=11 // pred_fallthru
          _
        // Predicated region
        $region29: #{tpu_custom_call.1} parent=11 // pred_check
          %p320 = pneg %p178
        $region30: #{tpu_custom_call.1} parent=11 // pred_check_branch
          %322 = sbr.rel (%p320) target = $region32
        $region31: #{tpu_custom_call.1} parent=11 // pred_region
          _
        $region32: #{tpu_custom_call.1} parent=11 // pred_fallthru
          _
        // Predicated region
        $region33: #{tpu_custom_call.1} parent=11 // pred_check
          %p323 = pneg %p199
        $region34: #{tpu_custom_call.1} parent=11 // pred_check_branch
          %325 = sbr.rel (%p323) target = $region36
        $region35: #{tpu_custom_call.1} parent=11 // pred_region
          _
        $region36: #{tpu_custom_call.1} parent=11 // pred_fallthru
          _
        // Predicated region
        $region37: #{tpu_custom_call.1} parent=11 // pred_check
          %p326 = pneg %p220
        $region38: #{tpu_custom_call.1} parent=11 // pred_check_branch
          %328 = sbr.rel (%p326) target = $region40
        $region39: #{tpu_custom_call.1} parent=11 // pred_region
          _
        $region40: #{tpu_custom_call.1} parent=11 // pred_fallthru
          _
        // Predicated region
        $region41: #{tpu_custom_call.1} parent=11 // pred_check
          %p329 = pneg %p241
        $region42: #{tpu_custom_call.1} parent=11 // pred_check_branch
          %331 = sbr.rel (%p329) target = $region44
        $region43: #{tpu_custom_call.1} parent=11 // pred_region
          _
        $region44: #{tpu_custom_call.1} parent=11 // pred_fallthru
          _
      $region12: #{tpu_custom_call.1} parent=5 // pred_fallthru
        _
      %p332 = scmp.lt.s32.totalorder %s21, 2
      // Predicated region
      $region45: #{tpu_custom_call.1} parent=5 // pred_check
        %p333 = pneg %p332
      $region46: #{tpu_custom_call.1} parent=5 // pred_check_branch
        %335 = sbr.rel (%p333) target = $region48
      $region47: #{tpu_custom_call.1} parent=5 // pred_region
        // Predicated region
        $region49: #{tpu_custom_call.1} parent=47 // pred_check
          %p336 = pneg %p41
        $region50: #{tpu_custom_call.1} parent=47 // pred_check_branch
          %338 = sbr.rel (%p336) target = $region52
        $region51: #{tpu_custom_call.1} parent=47 // pred_region
          %s339 = smul.u32 2, %s21
          %p340 = scmp.lt.s32.totalorder %s339, 3
          %s341 = scalar_select %p340, %s339, 3
          %s342 = smul.addr %s341, 8
          %s343 = scalar_lea.vmem %s0, %s342
          %s344 = smul.u32 2, %s21
        $region52: #{tpu_custom_call.1} parent=47 // pred_fallthru
          _
        // Predicated region
        $region53: #{tpu_custom_call.1} parent=47 // pred_check
          %p345 = pneg %p67
        $region54: #{tpu_custom_call.1} parent=47 // pred_check_branch
          %347 = sbr.rel (%p345) target = $region56
        $region55: #{tpu_custom_call.1} parent=47 // pred_region
          %s348 = smul.u32 2, %s21
          %p349 = scmp.lt.s32.totalorder %s348, 3
          %s350 = scalar_select %p349, %s348, 3
          %s351 = smul.addr %s350, 8
          %s352 = scalar_lea.vmem %s1, %s351
          %s353 = smul.u32 2, %s21
        $region56: #{tpu_custom_call.1} parent=47 // pred_fallthru
          _
      $region48: #{tpu_custom_call.1} parent=5 // pred_fallthru
        _
      %p354 = scmp.le.s32.totalorder 1, %s21
      %p355 = scmp.lt.s32.totalorder %s21, 3
      %p356 = pnand %p354, %p355
      %p357 = pneg %p356
      // Predicated region
      $region57: #{tpu_custom_call.1} parent=5 // pred_check
        _
      $region58: #{tpu_custom_call.1} parent=5 // pred_check_branch
        %359 = sbr.rel (%p356) target = $region60
      $region59: #{tpu_custom_call.1} parent=5 // pred_region
        %s360 = ssub.s32 %s21, 1
        %s361 = smul.u32 2, %s26
        %p362 = scmp.lt.s32.totalorder %s361, 3
        %s363 = scalar_select %p362, %s361, 3
        %s364 = smul.addr %s363, 8
        %s365 = scalar_lea.vmem %s0, %s364
        %p366 = pneg %p47
        %p367 = pneg %p44
        %s368 = smul.u32 2, %s26
        %p369 = scmp.lt.s32.totalorder %s368, 3
        %s370 = scalar_select %p369, %s368, 3
        %s371 = smul.addr %s370, 8
        %s372 = scalar_lea.vmem %s1, %s371
        %p373 = pneg %p73
        %p374 = pneg %p70
        %p375 = pneg %p94
        %p376 = pneg %p91
        %p377 = pneg %p115
        %p378 = pneg %p112
        %p379 = pneg %p136
        %p380 = pneg %p133
        %p381 = pneg %p157
        %p382 = pneg %p154
        %p383 = pneg %p178
        %p384 = pneg %p175
        %p385 = pneg %p199
        %p386 = pneg %p196
        %p387 = pneg %p220
        %p388 = pneg %p217
        %p389 = pneg %p241
        %p390 = pneg %p238
        %p391 = pneg %p267
        %p392 = pneg %p264
        %s393 = sand.u32 %s254, 1
        %s394 = scalar_lea.sflag [#allocation3], %s393
        %s395 = sand.u32 %s254, 1
        %s396 = smul.addr %s395, 64
        %s397 = scalar_lea.vmem [#allocation2], %s396
        %p398 = pneg %p293
        %p399 = pneg %p290
        %s400 = smul.u32 2, %s26
        %p401 = scmp.lt.s32.totalorder %s400, 3
        %s402 = scalar_select %p401, %s400, 3
        %s403 = smul.addr %s402, 8
        %s404 = scalar_lea.vmem %s11, %s403
        %s405 = smul.u32 2, %s26
        %p406 = scmp.lt.s32.totalorder %s405, 3
        %s407 = scalar_select %p406, %s405, 3
        %s408 = smul.addr %s407, 8
        %s409 = scalar_lea.vmem %s0, %s408
        %s410 = smul.u32 2, %s26
        %s411 = smul.u32 2, %s26
        %p412 = scmp.lt.s32.totalorder %s411, 3
        %s413 = scalar_select %p412, %s411, 3
        %s414 = smul.addr %s413, 8
        %s415 = scalar_lea.vmem %s1, %s414
        %s416 = smul.u32 2, %s26
        %s417 = smul.u32 2, %s26
        %s418 = smul.u32 2, %s26
        %p419 = scmp.lt.s32.totalorder %s418, 3
        %s420 = scalar_select %p419, %s418, 3
        %s421 = smul.addr %s420, 8
        %s422 = scalar_lea.vmem %s11, %s421
        %s423 = smul.u32 2, %s26
        %v424 = vld [vmem:[%s409] sm:$0xff]
        %v425 = vld [vmem:[%s409 + $0x8] sm:$0xff]
        %v426 = vld [vmem:[%s415] sm:$0xff]
        %v427 = vld [vmem:[%s415 + $0x8] sm:$0xff]
        %v428 = vlaneseq
        %v429 = vshrl.u32 %v428, 7
        %vm430 = vcmp.eq.s32.totalorder %v429, 0
        %vm431 = vcmp.eq.s32.totalorder %v429, 7
        %vm434 = vcmask 1040384
        %v435 = vrot.slane %v424, 7
        %v436 = vrot.slane %v425, 7
        %v437 = vsel %vm434, %v435, %v436
        %v440 = vsel %vm434, 0.0, %v435
        %v441 = vsel %vm430, 1, 0
        %442 = vset.pattern.permute.xlu0 0
        %443 = vperm.xlu0 %442, %v441
        %v444 = vpop.permute.xlu0 %443
        %vm445 = vcmp.eq.s32.totalorder %v444, 1
        %v446 = vsel %vm445, 0.0, %v440
        %v447 = vsel %vm445, 0.0, %v437
        %vm448 = vcmask 1046528
        %v449 = vrot.slane %v424, 1
        %v450 = vrot.slane %v425, 1
        %v451 = vsel %vm448, %v449, %v450
        %v454 = vsel %vm448, %v450, 0.0
        %v455 = vsel %vm431, 1, 0
        %456 = vset.pattern.permute.xlu0 0
        %457 = vperm.xlu0 %456, %v455
        %v458 = vpop.permute.xlu0 %457
        %vm459 = vcmp.eq.s32.totalorder %v458, 1
        %v460 = vsel %vm459, 0.0, %v451
        %v461 = vsel %vm459, 0.0, %v454
        %462 = vrot.lane.b32.xlu0 %v424, 32
        %v463 = vpop.permute.xlu0 %462
        %464 = vrot.lane.b32.xlu0 %v425, 32
        %v465 = vpop.permute.xlu0 %464
        %470 = vrot.lane.b32.xlu0 %v460, 64
        %v471 = vpop.permute.xlu0 %470
        %472 = vrot.lane.b32.xlu0 %v461, 64
        %v473 = vpop.permute.xlu0 %472
        %vm476 = vcmask 261120
        %v477 = vsel %vm476, %v446, %v463
        %v478 = vsel %vm476, %v447, %v465
        %vm479 = vcmask 523264
        %v480 = vsel %vm479, %v477, %v471
        %v481 = vsel %vm479, %v478, %v473
        %v482 = vld [vmem:[%s2] sm:$0xff]
        %v483 = vld [vmem:[%s2 + $0x8] sm:$0xff]
        %v484 = vld [vmem:[%s2 + $0x10] sm:$0xff]
        %v485 = vld [vmem:[%s2 + $0x18] sm:$0xff]
        %v486 = vld [vmem:[%s2 + $0x20] sm:$0xff]
        %v487 = vld [vmem:[%s2 + $0x28] sm:$0xff]
        %v488 = vld [vmem:[%s2 + $0x30] sm:$0xff]
        %v489 = vld [vmem:[%s2 + $0x38] sm:$0xff]
        %v490 = vld [vmem:[%s2 + $0x40] sm:$0xff]
        %v491 = vld [vmem:[%s2 + $0x48] sm:$0xff]
        %v492 = vld [vmem:[%s2 + $0x50] sm:$0xff]
        %v493 = vld [vmem:[%s2 + $0x58] sm:$0xff]
        %v494 = vld [vmem:[%s4] sm:$0x1]
        %v495 = vperm.slane %v494, 0
        %vm496 = vcmask 785408
        %v498 = vsel %vm496, %v480, 0
        %v501 = vsel %vm496, %v481, 0
        %503 = vmatpush.msra.mxu0 0.0
        %504 = vmatpush.msra.mxu0 0.0
        %505 = vmatpush.msra.mxu0 0.0
        %506 = vmatpush.msra.mxu0 0.0
        %507 = vmatpush.msra.mxu0 %v493
        %508 = vmatpush.msra.mxu0 %v492
        %509 = vmatpush.msra.mxu0 %v491
        %510 = vmatpush.msra.mxu0 %v490
        %511 = vmatpush.msra.mxu0 %v489
        %512 = vmatpush.msra.mxu0 %v488
        %513 = vmatpush.msra.mxu0 %v487
        %514 = vmatpush.msra.mxu0 %v486
        %515 = vmatpush.msra.mxu0 %v485
        %516 = vmatpush.msra.mxu0 %v484
        %517 = vmatpush.msra.mxu0 %v483
        %518 = vmatpush.msra.mxu0 %v482
        %519 = vmatmul.f32.gmra.mxu0 %v498
        %v520 = vpop.f32.mrf.mxu0
        %v521 = vadd.f32 %v495, %v520
        %522 = vmatmul.f32.gmra.mxu0 %v501
        %v523 = vpop.f32.mrf.mxu0
        %v524 = vadd.f32 %v495, %v523
        %525 = vdwg.mxu0
        %v526 = vmax.f32 %v521, 0.0
        %v527 = vmax.f32 %v524, 0.0
        %v528 = vld [vmem:[%s4 + $0x1] sm:$0x1]
        %v529 = vld [vmem:[%s4 + $0x2] sm:$0x1]
        %v530 = vsel %vm476, %v526, 0.0
        %531 = vadd.xlane.f32.xlu0 %v530
        %v532 = vpop.xlane.xlu0 %531
        %v533 = vsel %vm476, %v527, 0.0
        %534 = vadd.xlane.f32.xlu0 %v533
        %v535 = vpop.xlane.xlu0 %534
        %v536 = vrcp.pop 32.0
        %v537 = vmul.f32 32.0, %v536
        %v538 = vsub.f32 1.0, %v537
        %v539 = vmul.f32 %v536, %v538
        %v540 = vadd.f32 %v536, %v539
        %vm541 = vweird.f32 %v536
        %v542 = vsel %vm541, %v536, %v540
        %v543 = vmul.f32 %v532, %v542
        %v544 = vmul.f32 %v535, %v542
        %v545 = vsub.f32 %v526, %v543
        %v546 = vsub.f32 %v527, %v544
        %v547 = vmul.f32 %v545, %v545
        %v548 = vmul.f32 %v546, %v546
        %v549 = vsel %vm476, %v547, 0.0
        %550 = vadd.xlane.f32.xlu0 %v549
        %v551 = vpop.xlane.xlu0 %550
        %v552 = vsel %vm476, %v548, 0.0
        %553 = vadd.xlane.f32.xlu0 %v552
        %v554 = vpop.xlane.xlu0 %553
        %v555 = vmul.f32 %v551, %v542
        %v556 = vmul.f32 %v554, %v542
        %v557 = vadd.f32 %v555, 1e-05
        %v558 = vadd.f32 %v556, 1e-05
        %v559 = vrsqrt.pop %v557
        %v560 = vmul.f32 %v559, %v557
        %v561 = vmul.f32 %v560, %v559
        %v562 = vmul.f32 0.5, %v561
        %v563 = vsub.f32 1.5, %v562
        %v564 = vmul.f32 %v559, %v563
        %vm565 = vweird.f32 %v557
        %vm566 = vweird.f32 %v559
        %vm567 = vmor %vm565, %vm566
        %v568 = vsel %vm567, %v559, %v564
        %v569 = vrsqrt.pop %v558
        %v570 = vmul.f32 %v569, %v558
        %v571 = vmul.f32 %v570, %v569
        %v572 = vmul.f32 0.5, %v571
        %v573 = vsub.f32 1.5, %v572
        %v574 = vmul.f32 %v569, %v573
        %vm575 = vweird.f32 %v558
        %vm576 = vweird.f32 %v569
        %vm577 = vmor %vm575, %vm576
        %v578 = vsel %vm577, %v569, %v574
        %v579 = vmul.f32 %v545, %v568
        %v580 = vmul.f32 %v546, %v578
        %583 = vrot.lane.b32.xlu0 %v526, 96
        %v584 = vpop.permute.xlu0 %583
        %585 = vrot.lane.b32.xlu0 %v527, 96
        %v586 = vpop.permute.xlu0 %585
        %v589 = vsel %vm476, %v584, 0.0
        %590 = vadd.xlane.f32.xlu0 %v589
        %v591 = vpop.xlane.xlu0 %590
        %v592 = vsel %vm476, %v586, 0.0
        %593 = vadd.xlane.f32.xlu0 %v592
        %v594 = vpop.xlane.xlu0 %593
        %v595 = vmul.f32 %v591, %v542
        %v596 = vmul.f32 %v594, %v542
        %v597 = vsub.f32 %v526, %v595
        %v598 = vsub.f32 %v527, %v596
        %v599 = vmul.f32 %v597, %v597
        %v600 = vmul.f32 %v598, %v598
        %603 = vrot.lane.b32.xlu0 %v599, 96
        %v604 = vpop.permute.xlu0 %603
        %605 = vrot.lane.b32.xlu0 %v600, 96
        %v606 = vpop.permute.xlu0 %605
        %v609 = vsel %vm476, %v604, 0.0
        %610 = vadd.xlane.f32.xlu0 %v609
        %v611 = vpop.xlane.xlu0 %610
        %v612 = vsel %vm476, %v606, 0.0
        %613 = vadd.xlane.f32.xlu0 %v612
        %v614 = vpop.xlane.xlu0 %613
        %v615 = vmul.f32 %v611, %v542
        %v616 = vmul.f32 %v614, %v542
        %v617 = vadd.f32 %v615, 1e-05
        %v618 = vadd.f32 %v616, 1e-05
        %v619 = vrsqrt.pop %v617
        %v620 = vmul.f32 %v619, %v617
        %v621 = vmul.f32 %v620, %v619
        %v622 = vmul.f32 0.5, %v621
        %v623 = vsub.f32 1.5, %v622
        %v624 = vmul.f32 %v619, %v623
        %vm625 = vweird.f32 %v617
        %vm626 = vweird.f32 %v619
        %vm627 = vmor %vm625, %vm626
        %v628 = vsel %vm627, %v619, %v624
        %v629 = vrsqrt.pop %v618
        %v630 = vmul.f32 %v629, %v618
        %v631 = vmul.f32 %v630, %v629
        %v632 = vmul.f32 0.5, %v631
        %v633 = vsub.f32 1.5, %v632
        %v634 = vmul.f32 %v629, %v633
        %vm635 = vweird.f32 %v618
        %vm636 = vweird.f32 %v629
        %vm637 = vmor %vm635, %vm636
        %v638 = vsel %vm637, %v629, %v634
        %v639 = vmul.f32 %v597, %v628
        %v640 = vmul.f32 %v598, %v638
        %v641 = vsel %vm476, %v579, %v639
        %v642 = vsel %vm476, %v580, %v640
        %v643 = vperm.slane %v528, 0
        %v644 = vmul.f32 %v641, %v643
        %v645 = vmul.f32 %v642, %v643
        %v646 = vperm.slane %v529, 0
        %v647 = vadd.f32 %v644, %v646
        %v648 = vadd.f32 %v645, %v646
        %v651 = vrot.slane %v647, 7
        %v652 = vrot.slane %v648, 7
        %v653 = vsel %vm434, %v651, %v652
        %v656 = vsel %vm434, 0.0, %v651
        %v657 = vsel %vm445, 0.0, %v656
        %v658 = vsel %vm445, 0.0, %v653
        %v659 = vrot.slane %v647, 1
        %v660 = vrot.slane %v648, 1
        %v661 = vsel %vm448, %v659, %v660
        %v664 = vsel %vm448, %v660, 0.0
        %v665 = vsel %vm459, 0.0, %v661
        %v666 = vsel %vm459, 0.0, %v664
        %667 = vrot.lane.b32.xlu0 %v647, 64
        %v668 = vpop.permute.xlu0 %667
        %669 = vrot.lane.b32.xlu0 %v648, 64
        %v670 = vpop.permute.xlu0 %669
        %v673 = vsel %vm479, %v657, %v668
        %v674 = vsel %vm479, %v658, %v670
        %v675 = vld [vmem:[%s3] sm:$0xff]
        %v676 = vld [vmem:[%s3 + $0x8] sm:$0xff]
        %v677 = vld [vmem:[%s3 + $0x10] sm:$0xff]
        %v678 = vld [vmem:[%s3 + $0x18] sm:$0xff]
        %v679 = vld [vmem:[%s3 + $0x20] sm:$0xff]
        %v680 = vld [vmem:[%s3 + $0x28] sm:$0xff]
        %v681 = vld [vmem:[%s3 + $0x30] sm:$0xff]
        %v682 = vld [vmem:[%s3 + $0x38] sm:$0xff]
        %v683 = vld [vmem:[%s3 + $0x40] sm:$0xff]
        %v684 = vld [vmem:[%s3 + $0x48] sm:$0xff]
        %v685 = vld [vmem:[%s3 + $0x50] sm:$0xff]
        %v686 = vld [vmem:[%s3 + $0x58] sm:$0xff]
        %v687 = vld [vmem:[%s3 + $0x60] sm:$0xff]
        %v688 = vld [vmem:[%s3 + $0x68] sm:$0xff]
        %v689 = vld [vmem:[%s3 + $0x70] sm:$0xff]
        %v690 = vld [vmem:[%s3 + $0x78] sm:$0xff]
        %v691 = vld [vmem:[%s3 + $0x80] sm:$0xff]
        %v692 = vld [vmem:[%s3 + $0x88] sm:$0xff]
        %v693 = vld [vmem:[%s3 + $0x90] sm:$0xff]
        %v694 = vld [vmem:[%s3 + $0x98] sm:$0xff]
        %v695 = vld [vmem:[%s3 + $0xa0] sm:$0xff]
        %v696 = vld [vmem:[%s3 + $0xa8] sm:$0xff]
        %v697 = vld [vmem:[%s3 + $0xb0] sm:$0xff]
        %v698 = vld [vmem:[%s3 + $0xb8] sm:$0xff]
        %v699 = vld [vmem:[%s4 + $0x3] sm:$0x1]
        %v700 = vperm.slane %v699, 0
        %v702 = vsel %vm479, %v665, 0
        %v705 = vsel %vm479, %v666, 0
        %707 = vmatpush.msra.mxu0 %v690
        %708 = vmatpush.msra.mxu0 %v689
        %709 = vmatpush.msra.mxu0 %v688
        %710 = vmatpush.msra.mxu0 %v687
        %711 = vmatpush.msra.mxu0 %v686
        %712 = vmatpush.msra.mxu0 %v685
        %713 = vmatpush.msra.mxu0 %v684
        %714 = vmatpush.msra.mxu0 %v683
        %715 = vmatpush.msra.mxu0 %v682
        %716 = vmatpush.msra.mxu0 %v681
        %717 = vmatpush.msra.mxu0 %v680
        %718 = vmatpush.msra.mxu0 %v679
        %719 = vmatpush.msra.mxu0 %v678
        %720 = vmatpush.msra.mxu0 %v677
        %721 = vmatpush.msra.mxu0 %v676
        %722 = vmatpush.msra.mxu0 %v675
        %723 = vmatmul.f32.gmra.mxu0 %v673
        %v724 = vpop.f32.mrf.mxu0
        %v725 = vadd.f32 %v700, %v724
        %726 = vmatmul.f32.gmra.mxu0 %v674
        %v727 = vpop.f32.mrf.mxu0
        %v728 = vadd.f32 %v700, %v727
        %729 = vdwg.mxu0
        %730 = vmatpush.msra.mxu0 0.0
        %731 = vmatpush.msra.mxu0 0.0
        %732 = vmatpush.msra.mxu0 0.0
        %733 = vmatpush.msra.mxu0 0.0
        %734 = vmatpush.msra.mxu0 0.0
        %735 = vmatpush.msra.mxu0 0.0
        %736 = vmatpush.msra.mxu0 0.0
        %737 = vmatpush.msra.mxu0 0.0
        %738 = vmatpush.msra.mxu0 %v698
        %739 = vmatpush.msra.mxu0 %v697
        %740 = vmatpush.msra.mxu0 %v696
        %741 = vmatpush.msra.mxu0 %v695
        %742 = vmatpush.msra.mxu0 %v694
        %743 = vmatpush.msra.mxu0 %v693
        %744 = vmatpush.msra.mxu0 %v692
        %745 = vmatpush.msra.mxu0 %v691
        %746 = vmatmul.f32.gmra.mxu0 %v702
        %v747 = vpop.f32.mrf.mxu0
        %v748 = vadd.f32 %v725, %v747
        %749 = vmatmul.f32.gmra.mxu0 %v705
        %v750 = vpop.f32.mrf.mxu0
        %v751 = vadd.f32 %v728, %v750
        %752 = vdwg.mxu0
        %v753 = vmax.f32 %v748, 0.0
        %v754 = vmax.f32 %v751, 0.0
        %v755 = vld [vmem:[%s4 + $0x4] sm:$0x1]
        %v756 = vld [vmem:[%s4 + $0x5] sm:$0x1]
        %v757 = vsel %vm476, %v753, 0.0
        %758 = vadd.xlane.f32.xlu0 %v757
        %v759 = vpop.xlane.xlu0 %758
        %v760 = vsel %vm476, %v754, 0.0
        %761 = vadd.xlane.f32.xlu0 %v760
        %v762 = vpop.xlane.xlu0 %761
        %v763 = vmul.f32 %v759, %v542
        %v764 = vmul.f32 %v762, %v542
        %v765 = vsub.f32 %v753, %v763
        %v766 = vsub.f32 %v754, %v764
        %v767 = vmul.f32 %v765, %v765
        %v768 = vmul.f32 %v766, %v766
        %v769 = vsel %vm476, %v767, 0.0
        %770 = vadd.xlane.f32.xlu0 %v769
        %v771 = vpop.xlane.xlu0 %770
        %v772 = vsel %vm476, %v768, 0.0
        %773 = vadd.xlane.f32.xlu0 %v772
        %v774 = vpop.xlane.xlu0 %773
        %v775 = vmul.f32 %v771, %v542
        %v776 = vmul.f32 %v774, %v542
        %v777 = vadd.f32 %v775, 1e-05
        %v778 = vadd.f32 %v776, 1e-05
        %v779 = vrsqrt.pop %v777
        %v780 = vmul.f32 %v779, %v777
        %v781 = vmul.f32 %v780, %v779
        %v782 = vmul.f32 0.5, %v781
        %v783 = vsub.f32 1.5, %v782
        %v784 = vmul.f32 %v779, %v783
        %vm785 = vweird.f32 %v777
        %vm786 = vweird.f32 %v779
        %vm787 = vmor %vm785, %vm786
        %v788 = vsel %vm787, %v779, %v784
        %v789 = vrsqrt.pop %v778
        %v790 = vmul.f32 %v789, %v778
        %v791 = vmul.f32 %v790, %v789
        %v792 = vmul.f32 0.5, %v791
        %v793 = vsub.f32 1.5, %v792
        %v794 = vmul.f32 %v789, %v793
        %vm795 = vweird.f32 %v778
        %vm796 = vweird.f32 %v789
        %vm797 = vmor %vm795, %vm796
        %v798 = vsel %vm797, %v789, %v794
        %v799 = vmul.f32 %v765, %v788
        %v800 = vmul.f32 %v766, %v798
        %803 = vrot.lane.b32.xlu0 %v753, 96
        %v804 = vpop.permute.xlu0 %803
        %805 = vrot.lane.b32.xlu0 %v754, 96
        %v806 = vpop.permute.xlu0 %805
        %v809 = vsel %vm476, %v804, 0.0
        %810 = vadd.xlane.f32.xlu0 %v809
        %v811 = vpop.xlane.xlu0 %810
        %v812 = vsel %vm476, %v806, 0.0
        %813 = vadd.xlane.f32.xlu0 %v812
        %v814 = vpop.xlane.xlu0 %813
        %v815 = vmul.f32 %v811, %v542
        %v816 = vmul.f32 %v814, %v542
        %v817 = vsub.f32 %v753, %v815
        %v818 = vsub.f32 %v754, %v816
        %v819 = vmul.f32 %v817, %v817
        %v820 = vmul.f32 %v818, %v818
        %823 = vrot.lane.b32.xlu0 %v819, 96
        %v824 = vpop.permute.xlu0 %823
        %825 = vrot.lane.b32.xlu0 %v820, 96
        %v826 = vpop.permute.xlu0 %825
        %v829 = vsel %vm476, %v824, 0.0
        %830 = vadd.xlane.f32.xlu0 %v829
        %v831 = vpop.xlane.xlu0 %830
        %v832 = vsel %vm476, %v826, 0.0
        %833 = vadd.xlane.f32.xlu0 %v832
        %v834 = vpop.xlane.xlu0 %833
        %v835 = vmul.f32 %v831, %v542
        %v836 = vmul.f32 %v834, %v542
        %v837 = vadd.f32 %v835, 1e-05
        %v838 = vadd.f32 %v836, 1e-05
        %v839 = vrsqrt.pop %v837
        %v840 = vmul.f32 %v839, %v837
        %v841 = vmul.f32 %v840, %v839
        %v842 = vmul.f32 0.5, %v841
        %v843 = vsub.f32 1.5, %v842
        %v844 = vmul.f32 %v839, %v843
        %vm845 = vweird.f32 %v837
        %vm846 = vweird.f32 %v839
        %vm847 = vmor %vm845, %vm846
        %v848 = vsel %vm847, %v839, %v844
        %v849 = vrsqrt.pop %v838
        %v850 = vmul.f32 %v849, %v838
        %v851 = vmul.f32 %v850, %v849
        %v852 = vmul.f32 0.5, %v851
        %v853 = vsub.f32 1.5, %v852
        %v854 = vmul.f32 %v849, %v853
        %vm855 = vweird.f32 %v838
        %vm856 = vweird.f32 %v849
        %vm857 = vmor %vm855, %vm856
        %v858 = vsel %vm857, %v849, %v854
        %v859 = vmul.f32 %v817, %v848
        %v860 = vmul.f32 %v818, %v858
        %v861 = vsel %vm476, %v799, %v859
        %v862 = vsel %vm476, %v800, %v860
        %v863 = vperm.slane %v755, 0
        %v864 = vmul.f32 %v861, %v863
        %v865 = vmul.f32 %v862, %v863
        %v866 = vperm.slane %v756, 0
        %v867 = vadd.f32 %v864, %v866
        %v868 = vadd.f32 %v865, %v866
        %v869 = vld [vmem:[%s4 + $0x6] sm:$0x1]
        %v870 = vperm.slane %v869, 0
        %v871 = vmul.f32 %v867, %v870
        %v872 = vmul.f32 %v868, %v870
        %v873 = vsel %vm476, %v871, 0.0
        %874 = vadd.xlane.f32.xlu0 %v873
        %v875 = vpop.xlane.xlu0 %874
        %v876 = vsel %vm476, %v872, 0.0
        %877 = vadd.xlane.f32.xlu0 %v876
        %v878 = vpop.xlane.xlu0 %877
        %v879 = vld [vmem:[%s4 + $0x7] sm:$0x1]
        %v880 = vperm.slane %v879, 0
        %v881 = vadd.f32 %v875, %v880
        %v882 = vadd.f32 %v878, %v880
        %885 = vrot.lane.b32.xlu0 %v871, 96
        %v886 = vpop.permute.xlu0 %885
        %887 = vrot.lane.b32.xlu0 %v872, 96
        %v888 = vpop.permute.xlu0 %887
        %v891 = vsel %vm476, %v886, 0.0
        %892 = vadd.xlane.f32.xlu0 %v891
        %v893 = vpop.xlane.xlu0 %892
        %v894 = vsel %vm476, %v888, 0.0
        %895 = vadd.xlane.f32.xlu0 %v894
        %v896 = vpop.xlane.xlu0 %895
        %v897 = vadd.f32 %v893, %v880
        %v898 = vadd.f32 %v896, %v880
        %v899 = vmul.f32 %v881, 1.442695
        %v900 = vpow.pop %v899
        %v901 = vmul.f32 %v882, 1.442695
        %v902 = vpow.pop %v901
        %v903 = vsub.f32 %v900, 1.0
        %v904 = vsub.f32 %v902, 1.0
        %v905 = vround.ne.pseudo %v903
        %v906 = vround.ne.pseudo %v904
        %v907 = vmax.f32 %v905, 0.0
        %v908 = vmax.f32 %v906, 0.0
        %vm909 = vcmp.gt.f32.partialorder %v426, 0.5
        %vm910 = vcmp.gt.f32.partialorder %v427, 0.5
        %v911 = vsel %vm909, 0.0, %v907
        %v912 = vsel %vm910, 0.0, %v908
        %v913 = vld [vmem:[%s8] sm:$0x1]
        %915 = vset.pattern.permute.xlu0 32
        %916 = vperm.xlu0 %915, %v897
        %v917 = vpop.permute.xlu0 %916
        %920 = vset.pattern.permute.xlu0 32
        %921 = vperm.xlu0 %920, %v898
        %v922 = vpop.permute.xlu0 %921
        %v924 = vperm.slane %v913, 0
        %vm925 = vcmp.gt.f32.partialorder %v917, %v924
        %vm926 = vcmp.gt.f32.partialorder %v922, %v924
        %v927 = vsel %vm925, 1, 0
        %v928 = vsel %vm926, 1, 0
        %v929 = vand.u32 %v927, 65535
        %v930 = vshrl.u32 %v927, 16
        %v931 = vcvt.s32.f32 %v929
        %v932 = vcvt.s32.f32 %v930
        %933 = vadd.xlane.f32.xlu0 %v931
        %v934 = vpop.xlane.xlu0 %933
        %935 = vadd.xlane.f32.xlu0 %v932
        %v936 = vpop.xlane.xlu0 %935
        %v937 = vcvt.f32.s32 %v934
        %v938 = vcvt.f32.s32 %v936
        %v939 = vshll.u32 %v938, 16
        %v940 = vadd.s32 %v939, %v937
        %v941 = vand.u32 %v928, 65535
        %v942 = vshrl.u32 %v928, 16
        %v943 = vcvt.s32.f32 %v941
        %v944 = vcvt.s32.f32 %v942
        %945 = vadd.xlane.f32.xlu0 %v943
        %v946 = vpop.xlane.xlu0 %945
        %947 = vadd.xlane.f32.xlu0 %v944
        %v948 = vpop.xlane.xlu0 %947
        %v949 = vcvt.f32.s32 %v946
        %v950 = vcvt.f32.s32 %v948
        %v951 = vshll.u32 %v950, 16
        %v952 = vadd.s32 %v951, %v949
        %v953 = vlaneseq
        %v954 = vand.u32 %v953, 127
        %vm955 = vcmp.eq.s32.totalorder %v954, %v940
        %vm956 = vcmp.eq.s32.totalorder %v954, %v952
        %v957 = vsel %vm955, 1, 0
        %v958 = vsel %vm956, 1, 0
        %v959 = vcvt.s32.f32 %v957
        %v960 = vcvt.s32.f32 %v958
        %v961 = vld [vmem:[%s9] sm:$0xff]
        %v962 = vld [vmem:[%s9 + $0x8] sm:$0xff]
        %v963 = vld [vmem:[%s9 + $0x10] sm:$0xff]
        %v964 = vld [vmem:[%s9 + $0x18] sm:$0xff]
        %v965 = vld [vmem:[%s9 + $0x20] sm:$0xff]
        %v966 = vld [vmem:[%s9 + $0x28] sm:$0xff]
        %v967 = vld [vmem:[%s9 + $0x30] sm:$0xff]
        %v968 = vld [vmem:[%s9 + $0x38] sm:$0xff]
        %v970 = vsel %vm479, %v959, 0
        %v973 = vsel %vm479, %v960, 0
        %975 = vmatpush.msra.mxu0 0.0
        %976 = vmatpush.msra.mxu0 0.0
        %977 = vmatpush.msra.mxu0 0.0
        %978 = vmatpush.msra.mxu0 0.0
        %979 = vmatpush.msra.mxu0 0.0
        %980 = vmatpush.msra.mxu0 0.0
        %981 = vmatpush.msra.mxu0 0.0
        %982 = vmatpush.msra.mxu0 0.0
        %983 = vmatpush.msra.mxu0 %v968
        %984 = vmatpush.msra.mxu0 %v967
        %985 = vmatpush.msra.mxu0 %v966
        %986 = vmatpush.msra.mxu0 %v965
        %987 = vmatpush.msra.mxu0 %v964
        %988 = vmatpush.msra.mxu0 %v963
        %989 = vmatpush.msra.mxu0 %v962
        %990 = vmatpush.msra.mxu0 %v961
        %991 = vmatmul.f32.gmra.mxu0 %v970
        %v992 = vpop.f32.mrf.mxu0
        %v993 = vadd.f32 0.0, %v992
        %994 = vmatmul.f32.gmra.mxu0 %v973
        %v995 = vpop.f32.mrf.mxu0
        %v996 = vadd.f32 0.0, %v995
        %997 = vdwg.mxu0
        %v998 = vadd.f32 %v424, %v993
        %v999 = vadd.f32 %v425, %v996
        %v1002 = vrot.slane %v998, 7
        %v1003 = vrot.slane %v999, 7
        %v1004 = vsel %vm434, %v1002, %v1003
        %v1007 = vsel %vm434, 0.0, %v1002
        %v1008 = vsel %vm445, 0.0, %v1007
        %v1009 = vsel %vm445, 0.0, %v1004
        %v1010 = vrot.slane %v998, 1
        %v1011 = vrot.slane %v999, 1
        %v1012 = vsel %vm448, %v1010, %v1011
        %v1015 = vsel %vm448, %v1011, 0.0
        %v1016 = vsel %vm459, 0.0, %v1012
        %v1017 = vsel %vm459, 0.0, %v1015
        %1018 = vrot.lane.b32.xlu0 %v998, 32
        %v1019 = vpop.permute.xlu0 %1018
        %1020 = vrot.lane.b32.xlu0 %v999, 32
        %v1021 = vpop.permute.xlu0 %1020
        %1026 = vrot.lane.b32.xlu0 %v1016, 64
        %v1027 = vpop.permute.xlu0 %1026
        %1028 = vrot.lane.b32.xlu0 %v1017, 64
        %v1029 = vpop.permute.xlu0 %1028
        %v1032 = vsel %vm476, %v1008, %v1019
        %v1033 = vsel %vm476, %v1009, %v1021
        %v1034 = vsel %vm479, %v1032, %v1027
        %v1035 = vsel %vm479, %v1033, %v1029
        %v1036 = vld [vmem:[%s5] sm:$0xff]
        %v1037 = vld [vmem:[%s5 + $0x8] sm:$0xff]
        %v1038 = vld [vmem:[%s5 + $0x10] sm:$0xff]
        %v1039 = vld [vmem:[%s5 + $0x18] sm:$0xff]
        %v1040 = vld [vmem:[%s5 + $0x20] sm:$0xff]
        %v1041 = vld [vmem:[%s5 + $0x28] sm:$0xff]
        %v1042 = vld [vmem:[%s5 + $0x30] sm:$0xff]
        %v1043 = vld [vmem:[%s5 + $0x38] sm:$0xff]
        %v1044 = vld [vmem:[%s5 + $0x40] sm:$0xff]
        %v1045 = vld [vmem:[%s5 + $0x48] sm:$0xff]
        %v1046 = vld [vmem:[%s5 + $0x50] sm:$0xff]
        %v1047 = vld [vmem:[%s5 + $0x58] sm:$0xff]
        %v1048 = vld [vmem:[%s7] sm:$0x1]
        %v1049 = vperm.slane %v1048, 0
        %v1051 = vsel %vm496, %v1034, 0
        %v1054 = vsel %vm496, %v1035, 0
        %1056 = vmatpush.msra.mxu0 0.0
        %1057 = vmatpush.msra.mxu0 0.0
        %1058 = vmatpush.msra.mxu0 0.0
        %1059 = vmatpush.msra.mxu0 0.0
        %1060 = vmatpush.msra.mxu0 %v1047
        %1061 = vmatpush.msra.mxu0 %v1046
        %1062 = vmatpush.msra.mxu0 %v1045
        %1063 = vmatpush.msra.mxu0 %v1044
        %1064 = vmatpush.msra.mxu0 %v1043
        %1065 = vmatpush.msra.mxu0 %v1042
        %1066 = vmatpush.msra.mxu0 %v1041
        %1067 = vmatpush.msra.mxu0 %v1040
        %1068 = vmatpush.msra.mxu0 %v1039
        %1069 = vmatpush.msra.mxu0 %v1038
        %1070 = vmatpush.msra.mxu0 %v1037
        %1071 = vmatpush.msra.mxu0 %v1036
        %1072 = vmatmul.f32.gmra.mxu0 %v1051
        %v1073 = vpop.f32.mrf.mxu0
        %v1074 = vadd.f32 %v1049, %v1073
        %1075 = vmatmul.f32.gmra.mxu0 %v1054
        %v1076 = vpop.f32.mrf.mxu0
        %v1077 = vadd.f32 %v1049, %v1076
        %1078 = vdwg.mxu0
        %v1079 = vmax.f32 %v1074, 0.0
        %v1080 = vmax.f32 %v1077, 0.0
        %v1081 = vld [vmem:[%s7 + $0x1] sm:$0x1]
        %v1082 = vld [vmem:[%s7 + $0x2] sm:$0x1]
        %v1083 = vsel %vm476, %v1079, 0.0
        %1084 = vadd.xlane.f32.xlu0 %v1083
        %v1085 = vpop.xlane.xlu0 %1084
        %v1086 = vsel %vm476, %v1080, 0.0
        %1087 = vadd.xlane.f32.xlu0 %v1086
        %v1088 = vpop.xlane.xlu0 %1087
        %v1089 = vmul.f32 %v1085, %v542
        %v1090 = vmul.f32 %v1088, %v542
        %v1091 = vsub.f32 %v1079, %v1089
        %v1092 = vsub.f32 %v1080, %v1090
        %v1093 = vmul.f32 %v1091, %v1091
        %v1094 = vmul.f32 %v1092, %v1092
        %v1095 = vsel %vm476, %v1093, 0.0
        %1096 = vadd.xlane.f32.xlu0 %v1095
        %v1097 = vpop.xlane.xlu0 %1096
        %v1098 = vsel %vm476, %v1094, 0.0
        %1099 = vadd.xlane.f32.xlu0 %v1098
        %v1100 = vpop.xlane.xlu0 %1099
        %v1101 = vmul.f32 %v1097, %v542
        %v1102 = vmul.f32 %v1100, %v542
        %v1103 = vadd.f32 %v1101, 1e-05
        %v1104 = vadd.f32 %v1102, 1e-05
        %v1105 = vrsqrt.pop %v1103
        %v1106 = vmul.f32 %v1105, %v1103
        %v1107 = vmul.f32 %v1106, %v1105
        %v1108 = vmul.f32 0.5, %v1107
        %v1109 = vsub.f32 1.5, %v1108
        %v1110 = vmul.f32 %v1105, %v1109
        %vm1111 = vweird.f32 %v1103
        %vm1112 = vweird.f32 %v1105
        %vm1113 = vmor %vm1111, %vm1112
        %v1114 = vsel %vm1113, %v1105, %v1110
        %v1115 = vrsqrt.pop %v1104
        %v1116 = vmul.f32 %v1115, %v1104
        %v1117 = vmul.f32 %v1116, %v1115
        %v1118 = vmul.f32 0.5, %v1117
        %v1119 = vsub.f32 1.5, %v1118
        %v1120 = vmul.f32 %v1115, %v1119
        %vm1121 = vweird.f32 %v1104
        %vm1122 = vweird.f32 %v1115
        %vm1123 = vmor %vm1121, %vm1122
        %v1124 = vsel %vm1123, %v1115, %v1120
        %v1125 = vmul.f32 %v1091, %v1114
        %v1126 = vmul.f32 %v1092, %v1124
        %v1127 = vperm.slane %v1081, 0
        %v1128 = vmul.f32 %v1125, %v1127
        %v1129 = vmul.f32 %v1126, %v1127
        %v1130 = vperm.slane %v1082, 0
        %v1131 = vadd.f32 %v1128, %v1130
        %v1132 = vadd.f32 %v1129, %v1130
        %v1135 = vrot.slane %v1131, 7
        %v1136 = vrot.slane %v1132, 7
        %v1137 = vsel %vm434, %v1135, %v1136
        %v1140 = vsel %vm434, 0.0, %v1135
        %v1141 = vsel %vm445, 0.0, %v1140
        %v1142 = vsel %vm445, 0.0, %v1137
        %v1143 = vrot.slane %v1131, 1
        %v1144 = vrot.slane %v1132, 1
        %v1145 = vsel %vm448, %v1143, %v1144
        %v1148 = vsel %vm448, %v1144, 0.0
        %v1149 = vsel %vm459, 0.0, %v1145
        %v1150 = vsel %vm459, 0.0, %v1148
        %1151 = vrot.lane.b32.xlu0 %v1131, 32
        %v1152 = vpop.permute.xlu0 %1151
        %1153 = vrot.lane.b32.xlu0 %v1132, 32
        %v1154 = vpop.permute.xlu0 %1153
        %1159 = vrot.lane.b32.xlu0 %v1149, 64
        %v1160 = vpop.permute.xlu0 %1159
        %1161 = vrot.lane.b32.xlu0 %v1150, 64
        %v1162 = vpop.permute.xlu0 %1161
        %v1165 = vsel %vm476, %v1141, %v1152
        %v1166 = vsel %vm476, %v1142, %v1154
        %v1167 = vsel %vm479, %v1165, %v1160
        %v1168 = vsel %vm479, %v1166, %v1162
        %v1169 = vld [vmem:[%s6] sm:$0xff]
        %v1170 = vld [vmem:[%s6 + $0x8] sm:$0xff]
        %v1171 = vld [vmem:[%s6 + $0x10] sm:$0xff]
        %v1172 = vld [vmem:[%s6 + $0x18] sm:$0xff]
        %v1173 = vld [vmem:[%s6 + $0x20] sm:$0xff]
        %v1174 = vld [vmem:[%s6 + $0x28] sm:$0xff]
        %v1175 = vld [vmem:[%s6 + $0x30] sm:$0xff]
        %v1176 = vld [vmem:[%s6 + $0x38] sm:$0xff]
        %v1177 = vld [vmem:[%s6 + $0x40] sm:$0xff]
        %v1178 = vld [vmem:[%s6 + $0x48] sm:$0xff]
        %v1179 = vld [vmem:[%s6 + $0x50] sm:$0xff]
        %v1180 = vld [vmem:[%s6 + $0x58] sm:$0xff]
        %v1181 = vld [vmem:[%s7 + $0x3] sm:$0x1]
        %v1182 = vperm.slane %v1181, 0
        %v1184 = vsel %vm496, %v1167, 0
        %v1187 = vsel %vm496, %v1168, 0
        %1189 = vmatpush.msra.mxu0 0.0
        %1190 = vmatpush.msra.mxu0 0.0
        %1191 = vmatpush.msra.mxu0 0.0
        %1192 = vmatpush.msra.mxu0 0.0
        %1193 = vmatpush.msra.mxu0 %v1180
        %1194 = vmatpush.msra.mxu0 %v1179
        %1195 = vmatpush.msra.mxu0 %v1178
        %1196 = vmatpush.msra.mxu0 %v1177
        %1197 = vmatpush.msra.mxu0 %v1176
        %1198 = vmatpush.msra.mxu0 %v1175
        %1199 = vmatpush.msra.mxu0 %v1174
        %1200 = vmatpush.msra.mxu0 %v1173
        %1201 = vmatpush.msra.mxu0 %v1172
        %1202 = vmatpush.msra.mxu0 %v1171
        %1203 = vmatpush.msra.mxu0 %v1170
        %1204 = vmatpush.msra.mxu0 %v1169
        %1205 = vmatmul.f32.gmra.mxu0 %v1184
        %v1206 = vpop.f32.mrf.mxu0
        %v1207 = vadd.f32 %v1182, %v1206
        %1208 = vmatmul.f32.gmra.mxu0 %v1187
        %v1209 = vpop.f32.mrf.mxu0
        %v1210 = vadd.f32 %v1182, %v1209
        %1211 = vdwg.mxu0
        %v1212 = vmax.f32 %v1207, 0.0
        %v1213 = vmax.f32 %v1210, 0.0
        %v1214 = vld [vmem:[%s7 + $0x4] sm:$0x1]
        %v1215 = vld [vmem:[%s7 + $0x5] sm:$0x1]
        %v1216 = vsel %vm476, %v1212, 0.0
        %1217 = vadd.xlane.f32.xlu0 %v1216
        %v1218 = vpop.xlane.xlu0 %1217
        %v1219 = vsel %vm476, %v1213, 0.0
        %1220 = vadd.xlane.f32.xlu0 %v1219
        %v1221 = vpop.xlane.xlu0 %1220
        %v1222 = vmul.f32 %v1218, %v542
        %v1223 = vmul.f32 %v1221, %v542
        %v1224 = vsub.f32 %v1212, %v1222
        %v1225 = vsub.f32 %v1213, %v1223
        %v1226 = vmul.f32 %v1224, %v1224
        %v1227 = vmul.f32 %v1225, %v1225
        %v1228 = vsel %vm476, %v1226, 0.0
        %1229 = vadd.xlane.f32.xlu0 %v1228
        %v1230 = vpop.xlane.xlu0 %1229
        %v1231 = vsel %vm476, %v1227, 0.0
        %1232 = vadd.xlane.f32.xlu0 %v1231
        %v1233 = vpop.xlane.xlu0 %1232
        %v1234 = vmul.f32 %v1230, %v542
        %v1235 = vmul.f32 %v1233, %v542
        %v1236 = vadd.f32 %v1234, 1e-05
        %v1237 = vadd.f32 %v1235, 1e-05
        %v1238 = vrsqrt.pop %v1236
        %v1239 = vmul.f32 %v1238, %v1236
        %v1240 = vmul.f32 %v1239, %v1238
        %v1241 = vmul.f32 0.5, %v1240
        %v1242 = vsub.f32 1.5, %v1241
        %v1243 = vmul.f32 %v1238, %v1242
        %vm1244 = vweird.f32 %v1236
        %vm1245 = vweird.f32 %v1238
        %vm1246 = vmor %vm1244, %vm1245
        %v1247 = vsel %vm1246, %v1238, %v1243
        %v1248 = vrsqrt.pop %v1237
        %v1249 = vmul.f32 %v1248, %v1237
        %v1250 = vmul.f32 %v1249, %v1248
        %v1251 = vmul.f32 0.5, %v1250
        %v1252 = vsub.f32 1.5, %v1251
        %v1253 = vmul.f32 %v1248, %v1252
        %vm1254 = vweird.f32 %v1237
        %vm1255 = vweird.f32 %v1248
        %vm1256 = vmor %vm1254, %vm1255
        %v1257 = vsel %vm1256, %v1248, %v1253
        %v1258 = vmul.f32 %v1224, %v1247
        %v1259 = vmul.f32 %v1225, %v1257
        %v1260 = vperm.slane %v1214, 0
        %v1261 = vmul.f32 %v1258, %v1260
        %v1262 = vmul.f32 %v1259, %v1260
        %v1263 = vperm.slane %v1215, 0
        %v1264 = vadd.f32 %v1261, %v1263
        %v1265 = vadd.f32 %v1262, %v1263
        %v1266 = vld [vmem:[%s7 + $0x6] sm:$0x1]
        %v1267 = vperm.slane %v1266, 0
        %v1268 = vmul.f32 %v1264, %v1267
        %v1269 = vmul.f32 %v1265, %v1267
        %v1270 = vsel %vm476, %v1268, 0.0
        %1271 = vadd.xlane.f32.xlu0 %v1270
        %v1272 = vpop.xlane.xlu0 %1271
        %v1273 = vsel %vm476, %v1269, 0.0
        %1274 = vadd.xlane.f32.xlu0 %v1273
        %v1275 = vpop.xlane.xlu0 %1274
        %v1276 = vld [vmem:[%s7 + $0x7] sm:$0x1]
        %v1277 = vperm.slane %v1276, 0
        %v1278 = vadd.f32 %v1272, %v1277
        %v1279 = vadd.f32 %v1275, %v1277
        %v1280 = vld [vmem:[%s8 + $0x1] sm:$0x1]
        %1282 = vset.pattern.permute.xlu0 0
        %1283 = vperm.xlu0 %1282, %v1278
        %v1284 = vpop.permute.xlu0 %1283
        %1287 = vset.pattern.permute.xlu0 0
        %1288 = vperm.xlu0 %1287, %v1279
        %v1289 = vpop.permute.xlu0 %1288
        %v1291 = vperm.slane %v1280, 0
        %vm1292 = vcmp.gt.f32.partialorder %v1284, %v1291
        %vm1293 = vcmp.gt.f32.partialorder %v1289, %v1291
        %v1294 = vsel %vm1292, 1, 0
        %v1295 = vsel %vm1293, 1, 0
        %v1296 = vand.u32 %v1294, 65535
        %v1297 = vshrl.u32 %v1294, 16
        %v1298 = vcvt.s32.f32 %v1296
        %v1299 = vcvt.s32.f32 %v1297
        %1300 = vadd.xlane.f32.xlu0 %v1298
        %v1301 = vpop.xlane.xlu0 %1300
        %1302 = vadd.xlane.f32.xlu0 %v1299
        %v1303 = vpop.xlane.xlu0 %1302
        %v1304 = vcvt.f32.s32 %v1301
        %v1305 = vcvt.f32.s32 %v1303
        %v1306 = vshll.u32 %v1305, 16
        %v1307 = vadd.s32 %v1306, %v1304
        %v1308 = vand.u32 %v1295, 65535
        %v1309 = vshrl.u32 %v1295, 16
        %v1310 = vcvt.s32.f32 %v1308
        %v1311 = vcvt.s32.f32 %v1309
        %1312 = vadd.xlane.f32.xlu0 %v1310
        %v1313 = vpop.xlane.xlu0 %1312
        %1314 = vadd.xlane.f32.xlu0 %v1311
        %v1315 = vpop.xlane.xlu0 %1314
        %v1316 = vcvt.f32.s32 %v1313
        %v1317 = vcvt.f32.s32 %v1315
        %v1318 = vshll.u32 %v1317, 16
        %v1319 = vadd.s32 %v1318, %v1316
        %vm1320 = vcmp.eq.s32.totalorder %v954, %v1307
        %vm1321 = vcmp.eq.s32.totalorder %v954, %v1319
        %v1322 = vsel %vm1320, 1, 0
        %v1323 = vsel %vm1321, 1, 0
        %v1324 = vcvt.s32.f32 %v1322
        %v1325 = vcvt.s32.f32 %v1323
        %s1326 = scalar_lea.vmem %s9, 64
        %v1327 = vld [vmem:[%s1326] sm:$0xff]
        %v1328 = vld [vmem:[%s1326 + $0x8] sm:$0xff]
        %v1329 = vld [vmem:[%s1326 + $0x10] sm:$0xff]
        %v1330 = vld [vmem:[%s1326 + $0x18] sm:$0xff]
        %v1331 = vld [vmem:[%s1326 + $0x20] sm:$0xff]
        %v1332 = vld [vmem:[%s1326 + $0x28] sm:$0xff]
        %v1333 = vld [vmem:[%s1326 + $0x30] sm:$0xff]
        %v1334 = vld [vmem:[%s1326 + $0x38] sm:$0xff]
        %v1336 = vsel %vm479, %v1324, 0
        %v1339 = vsel %vm479, %v1325, 0
        %1341 = vmatpush.msra.mxu0 0.0
        %1342 = vmatpush.msra.mxu0 0.0
        %1343 = vmatpush.msra.mxu0 0.0
        %1344 = vmatpush.msra.mxu0 0.0
        %1345 = vmatpush.msra.mxu0 0.0
        %1346 = vmatpush.msra.mxu0 0.0
        %1347 = vmatpush.msra.mxu0 0.0
        %1348 = vmatpush.msra.mxu0 0.0
        %1349 = vmatpush.msra.mxu0 %v1334
        %1350 = vmatpush.msra.mxu0 %v1333
        %1351 = vmatpush.msra.mxu0 %v1332
        %1352 = vmatpush.msra.mxu0 %v1331
        %1353 = vmatpush.msra.mxu0 %v1330
        %1354 = vmatpush.msra.mxu0 %v1329
        %1355 = vmatpush.msra.mxu0 %v1328
        %1356 = vmatpush.msra.mxu0 %v1327
        %1357 = vmatmul.f32.gmra.mxu0 %v1336
        %v1358 = vpop.f32.mrf.mxu0
        %v1359 = vadd.f32 0.0, %v1358
        %1360 = vmatmul.f32.gmra.mxu0 %v1339
        %v1361 = vpop.f32.mrf.mxu0
        %v1362 = vadd.f32 0.0, %v1361
        %1363 = vdwg.mxu0
        %v1364 = vadd.f32 %v998, %v1359
        %v1365 = vadd.f32 %v999, %v1362
        %1366 = vrot.lane.b32.xlu0 %v897, 97
        %v1367 = vpop.permute.xlu0 %1366
        %1368 = vrot.lane.b32.xlu0 %v898, 97
        %v1369 = vpop.permute.xlu0 %1368
        %1372 = vrot.lane.b32.xlu0 %v1278, 2
        %v1373 = vpop.permute.xlu0 %1372
        %1374 = vrot.lane.b32.xlu0 %v1279, 2
        %v1375 = vpop.permute.xlu0 %1374
        %1380 = vrot.lane.b32.xlu0 %v911, 3
        %v1381 = vpop.permute.xlu0 %1380
        %1382 = vrot.lane.b32.xlu0 %v912, 3
        %v1383 = vpop.permute.xlu0 %1382
        %vm1386 = vcmask 7168
        %v1387 = vsel %vm1386, %v881, %v1367
        %v1388 = vsel %vm1386, %v882, %v1369
        %vm1389 = vcmask 15360
        %v1390 = vsel %vm1389, %v1387, %v1373
        %v1391 = vsel %vm1389, %v1388, %v1375
        %vm1392 = vcmask 23552
        %v1393 = vsel %vm1392, %v1390, %v1381
        %v1394 = vsel %vm1392, %v1391, %v1383
        %vm1395 = vcmask 31744
        %v1396 = vsel %vm1395, %v1393, 0.0
        %v1397 = vsel %vm1395, %v1394, 0.0
        %vm1398 = vcmask 64512
        %1399 = vst.msk [vmem:[%s422] sm:$0xff] %vm1398, %v1396
        %1400 = vst.msk [vmem:[%s422 + $0x8] sm:$0xff] %vm1398, %v1397
        %v1401 = vrot.slane %v911, 7
        %v1403 = vsel %vm434, 0.0, %v1401
        %v1404 = vadd.f32 %v911, %v1403
        %v1406 = vrot.slane %v1404, 6
        %vm1408 = vcmask 1041408
        %v1409 = vsel %vm1408, 0.0, %v1406
        %v1410 = vadd.f32 %v1404, %v1409
        %v1412 = vrot.slane %v1410, 4
        %vm1414 = vcmask 1043456
        %v1415 = vsel %vm1414, 0.0, %v1412
        %v1416 = vadd.f32 %v1410, %v1415
        %v1417 = vsub.f32 %v1416, %v911
        %v1418 = vcvt.f32.s32.to.zero.pseudo %v1417
        %v1419 = vcvt.f32.s32.to.zero.pseudo %v1416
        %1420 = vset.pattern.permute.xlu0 0
        %1421 = vperm.xlu0 %1420, %v1418
        %v1422 = vpop.permute.xlu0 %1421
        %vm1423 = vcmp.ge.s32.totalorder %v954, %v1422
        %1424 = vset.pattern.permute.xlu0 0
        %1425 = vperm.xlu0 %1424, %v1419
        %v1426 = vpop.permute.xlu0 %1425
        %vm1427 = vcmp.lt.s32.totalorder %v954, %v1426
        %vm1428 = vmand %vm1423, %vm1427
        %v1429 = vsel %vm1428, 1, 0
        %v1430 = vcvt.s32.f32 %v1429
        %1431 = vxpose.xlu0.b32.start [1/16] %v1430, 128
        %1432 = vxpose.xlu0.b32.cont [2/16] 0.0, 128
        %1433 = vxpose.xlu0.b32.cont [3/16] 0.0, 128
        %1434 = vxpose.xlu0.b32.cont [4/16] 0.0, 128
        %1435 = vxpose.xlu0.b32.cont [5/16] 0.0, 128
        %1436 = vxpose.xlu0.b32.cont [6/16] 0.0, 128
        %1437 = vxpose.xlu0.b32.cont [7/16] 0.0, 128
        %1438 = vxpose.xlu0.b32.cont [8/16] 0.0, 128
        %1439 = vxpose.xlu0.b32.cont [9/16] 0.0, 128
        %1440 = vxpose.xlu0.b32.cont [10/16] 0.0, 128
        %1441 = vxpose.xlu0.b32.cont [11/16] 0.0, 128
        %1442 = vxpose.xlu0.b32.cont [12/16] 0.0, 128
        %1443 = vxpose.xlu0.b32.cont [13/16] 0.0, 128
        %1444 = vxpose.xlu0.b32.cont [14/16] 0.0, 128
        %1445 = vxpose.xlu0.b32.cont [15/16] 0.0, 128
        %1446 = vxpose.xlu0.b32.end [16/16] 0.0, 128
        %v1447 = vpop.trf.xlu0
        %v1448 = vpop.trf.xlu0
        %v1449 = vpop.trf.xlu0
        %v1450 = vpop.trf.xlu0
        %v1451 = vpop.trf.xlu0
        %v1452 = vpop.trf.xlu0
        %v1453 = vpop.trf.xlu0
        %v1454 = vpop.trf.xlu0
        %v1455 = vpop.trf.xlu0
        %v1456 = vpop.trf.xlu0
        %v1457 = vpop.trf.xlu0
        %v1458 = vpop.trf.xlu0
        %v1459 = vpop.trf.xlu0
        %v1460 = vpop.trf.xlu0
        %v1461 = vpop.trf.xlu0
        %v1462 = vpop.trf.xlu0
        %v1464 = vsel %vm1398, %v1447, 0
        %v1467 = vsel %vm1398, %v1448, 0
        %v1470 = vsel %vm1398, %v1449, 0
        %v1473 = vsel %vm1398, %v1450, 0
        %1475 = vmatpush.msra.mxu0 0.0
        %1476 = vmatpush.msra.mxu0 0.0
        %1477 = vmatpush.msra.mxu0 0.0
        %1478 = vmatpush.msra.mxu0 0.0
        %1479 = vmatpush.msra.mxu0 0.0
        %1480 = vmatpush.msra.mxu0 0.0
        %1481 = vmatpush.msra.mxu0 0.0
        %1482 = vmatpush.msra.mxu0 0.0
        %1483 = vmatpush.msra.mxu0 0.0
        %1484 = vmatpush.msra.mxu0 0.0
        %1485 = vmatpush.msra.mxu0 0.0
        %1486 = vmatpush.msra.mxu0 0.0
        %1487 = vmatpush.msra.mxu0 0.0
        %1488 = vmatpush.msra.mxu0 0.0
        %1489 = vmatpush.msra.mxu0 0.0
        %1490 = vmatpush.msra.mxu0 %v1364
        %1491 = vmatmul.f32.gmra.mxu0 %v1464
        %v1492 = vpop.f32.mrf.mxu0
        %v1493 = vadd.f32 0.0, %v1492
        %1494 = vmatmul.f32.gmra.mxu0 %v1467
        %v1495 = vpop.f32.mrf.mxu0
        %v1496 = vadd.f32 0.0, %v1495
        %1497 = vmatmul.f32.gmra.mxu0 %v1470
        %v1498 = vpop.f32.mrf.mxu0
        %v1499 = vadd.f32 0.0, %v1498
        %1500 = vmatmul.f32.gmra.mxu0 %v1473
        %v1501 = vpop.f32.mrf.mxu0
        %v1502 = vadd.f32 0.0, %v1501
        %1503 = vdwg.mxu0
        %1504 = vst.msk [vmem:[%s397] sm:$0xff] %vm476, %v1493
        %1505 = vst.msk [vmem:[%s397 + $0x8] sm:$0xff] %vm476, %v1496
        %1506 = vst.msk [vmem:[%s397 + $0x10] sm:$0xff] %vm476, %v1499
        %1507 = vst.msk [vmem:[%s397 + $0x18] sm:$0xff] %vm476, %v1502
        %v1508 = vrot.slane %v912, 7
        %v1510 = vsel %vm434, 0.0, %v1508
        %v1511 = vadd.f32 %v912, %v1510
        %v1513 = vrot.slane %v1511, 6
        %v1515 = vsel %vm1408, 0.0, %v1513
        %v1516 = vadd.f32 %v1511, %v1515
        %v1518 = vrot.slane %v1516, 4
        %v1520 = vsel %vm1414, 0.0, %v1518
        %v1521 = vadd.f32 %v1516, %v1520
        %v1522 = vsub.f32 %v1521, %v912
        %v1523 = vcvt.f32.s32.to.zero.pseudo %v1522
        %v1524 = vcvt.f32.s32.to.zero.pseudo %v1521
        %1525 = vset.pattern.permute.xlu0 0
        %1526 = vperm.xlu0 %1525, %v1523
        %v1527 = vpop.permute.xlu0 %1526
        %vm1528 = vcmp.ge.s32.totalorder %v954, %v1527
        %1529 = vset.pattern.permute.xlu0 0
        %1530 = vperm.xlu0 %1529, %v1524
        %v1531 = vpop.permute.xlu0 %1530
        %vm1532 = vcmp.lt.s32.totalorder %v954, %v1531
        %vm1533 = vmand %vm1528, %vm1532
        %v1534 = vsel %vm1533, 1, 0
        %v1535 = vcvt.s32.f32 %v1534
        %1536 = vxpose.xlu0.b32.start [1/16] %v1535, 128
        %1537 = vxpose.xlu0.b32.cont [2/16] 0.0, 128
        %1538 = vxpose.xlu0.b32.cont [3/16] 0.0, 128
        %1539 = vxpose.xlu0.b32.cont [4/16] 0.0, 128
        %1540 = vxpose.xlu0.b32.cont [5/16] 0.0, 128
        %1541 = vxpose.xlu0.b32.cont [6/16] 0.0, 128
        %1542 = vxpose.xlu0.b32.cont [7/16] 0.0, 128
        %1543 = vxpose.xlu0.b32.cont [8/16] 0.0, 128
        %1544 = vxpose.xlu0.b32.cont [9/16] 0.0, 128
        %1545 = vxpose.xlu0.b32.cont [10/16] 0.0, 128
        %1546 = vxpose.xlu0.b32.cont [11/16] 0.0, 128
        %1547 = vxpose.xlu0.b32.cont [12/16] 0.0, 128
        %1548 = vxpose.xlu0.b32.cont [13/16] 0.0, 128
        %1549 = vxpose.xlu0.b32.cont [14/16] 0.0, 128
        %1550 = vxpose.xlu0.b32.cont [15/16] 0.0, 128
        %1551 = vxpose.xlu0.b32.end [16/16] 0.0, 128
        %v1552 = vpop.trf.xlu0
        %v1553 = vpop.trf.xlu0
        %v1554 = vpop.trf.xlu0
        %v1555 = vpop.trf.xlu0
        %v1556 = vpop.trf.xlu0
        %v1557 = vpop.trf.xlu0
        %v1558 = vpop.trf.xlu0
        %v1559 = vpop.trf.xlu0
        %v1560 = vpop.trf.xlu0
        %v1561 = vpop.trf.xlu0
        %v1562 = vpop.trf.xlu0
        %v1563 = vpop.trf.xlu0
        %v1564 = vpop.trf.xlu0
        %v1565 = vpop.trf.xlu0
        %v1566 = vpop.trf.xlu0
        %v1567 = vpop.trf.xlu0
        %v1569 = vsel %vm1398, %v1552, 0
        %v1572 = vsel %vm1398, %v1553, 0
        %v1575 = vsel %vm1398, %v1554, 0
        %v1578 = vsel %vm1398, %v1555, 0
        %1580 = vmatpush.msra.mxu0 0.0
        %1581 = vmatpush.msra.mxu0 0.0
        %1582 = vmatpush.msra.mxu0 0.0
        %1583 = vmatpush.msra.mxu0 0.0
        %1584 = vmatpush.msra.mxu0 0.0
        %1585 = vmatpush.msra.mxu0 0.0
        %1586 = vmatpush.msra.mxu0 0.0
        %1587 = vmatpush.msra.mxu0 0.0
        %1588 = vmatpush.msra.mxu0 0.0
        %1589 = vmatpush.msra.mxu0 0.0
        %1590 = vmatpush.msra.mxu0 0.0
        %1591 = vmatpush.msra.mxu0 0.0
        %1592 = vmatpush.msra.mxu0 0.0
        %1593 = vmatpush.msra.mxu0 0.0
        %1594 = vmatpush.msra.mxu0 0.0
        %1595 = vmatpush.msra.mxu0 %v1365
        %1596 = vmatmul.f32.gmra.mxu0 %v1569
        %v1597 = vpop.f32.mrf.mxu0
        %v1598 = vadd.f32 0.0, %v1597
        %1599 = vmatmul.f32.gmra.mxu0 %v1572
        %v1600 = vpop.f32.mrf.mxu0
        %v1601 = vadd.f32 0.0, %v1600
        %1602 = vmatmul.f32.gmra.mxu0 %v1575
        %v1603 = vpop.f32.mrf.mxu0
        %v1604 = vadd.f32 0.0, %v1603
        %1605 = vmatmul.f32.gmra.mxu0 %v1578
        %v1606 = vpop.f32.mrf.mxu0
        %v1607 = vadd.f32 0.0, %v1606
        %1608 = vdwg.mxu0
        %s1609 = scalar_lea.vmem %s397, 32 [#allocation2]
        %1610 = vst.msk [vmem:[%s1609] sm:$0xff] %vm476, %v1598
        %1611 = vst.msk [vmem:[%s1609 + $0x8] sm:$0xff] %vm476, %v1601
        %1612 = vst.msk [vmem:[%s1609 + $0x10] sm:$0xff] %vm476, %v1604
        %1613 = vst.msk [vmem:[%s1609 + $0x18] sm:$0xff] %vm476, %v1607
        %s1614 = sand.u32 %s254, 1
        %s1615 = scalar_lea.sflag [#allocation3], %s1614
        %s1616 = sand.u32 %s254, 1
        %s1617 = smul.addr %s1616, 64
        %s1618 = scalar_lea.vmem [#allocation2], %s1617
        %s1619 = smul.u32 2, %s26
        %p1620 = scmp.lt.s32.totalorder %s1619, 3
        %s1621 = scalar_select %p1620, %s1619, 3
        %s1622 = smul.addr %s1621, 8
        %s1623 = scalar_lea.vmem %s11, %s1622
        // Predicated region
        $region61: #{tpu_custom_call.1} parent=59 // pred_check
          %p1624 = pneg %p264
        $region62: #{tpu_custom_call.1} parent=59 // pred_check_branch
          %1626 = sbr.rel (%p1624) target = $region64
        $region63: #{tpu_custom_call.1} parent=59 // pred_region
          %s1627 = smul.u32 2, %s26
          %1629 = vsyncadd %s1615, 0
          %s1630 = smul.addr %s1627, 4
          %s1631 = smul.addr %s1630, 8
          %s1632 = scalar_lea.hbm %s10, %s1631
          %s1633 = sshll.u32 %s1618, 4
          %s1634 = int_to_ptr.vmem [resolvable:$true] %s1633
          %s1635 = sshll.u32 %s1632, 4
          %s1636 = int_to_ptr.hbm [resolvable:$true] %s1635
          %1641 = dma.vmem_to_hbm [thread:$0]  %s1634, 1024, %s1636, %s1615, 128, 128, 8
        $region64: #{tpu_custom_call.1} parent=59 // pred_fallthru
          _
        // Predicated region
        $region65: #{tpu_custom_call.1} parent=59 // pred_check
          %p1642 = pneg %p290
        $region66: #{tpu_custom_call.1} parent=59 // pred_check_branch
          %1644 = sbr.rel (%p1642) target = $region68
        $region67: #{tpu_custom_call.1} parent=59 // pred_region
          %s1645 = smul.u32 2, %s26
        $region68: #{tpu_custom_call.1} parent=59 // pred_fallthru
          _
      $region60: #{tpu_custom_call.1} parent=5 // pred_fallthru
        _
      %p1646 = scmp.le.s32.totalorder 2, %s21
      // Predicated region
      $region69: #{tpu_custom_call.1} parent=5 // pred_check
        %p1647 = pneg %p1646
      $region70: #{tpu_custom_call.1} parent=5 // pred_check_branch
        %1649 = sbr.rel (%p1647) target = $region72
      $region71: #{tpu_custom_call.1} parent=5 // pred_region
        %s1650 = ssub.s32 %s21, 2
        // Predicated region
        $region73: #{tpu_custom_call.1} parent=71 // pred_check
          %p1651 = pneg %p270
        $region74: #{tpu_custom_call.1} parent=71 // pred_check_branch
          %1653 = sbr.rel (%p1651) target = $region76
        $region75: #{tpu_custom_call.1} parent=71 // pred_region
          %s1654 = sand.u32 %s255, 1
          %s1655 = scalar_lea.sflag [#allocation3], %s1654
          %s1656 = sand.u32 %s255, 1
          %s1657 = smul.addr %s1656, 64
          %s1658 = scalar_lea.vmem [#allocation2], %s1657
          %1660 = dma.done %s1655, 1024
        $region76: #{tpu_custom_call.1} parent=71 // pred_fallthru
          _
        // Predicated region
        $region77: #{tpu_custom_call.1} parent=71 // pred_check
          %p1661 = pneg %p296
        $region78: #{tpu_custom_call.1} parent=71 // pred_check_branch
          %1663 = sbr.rel (%p1661) target = $region80
        $region79: #{tpu_custom_call.1} parent=71 // pred_region
          %s1664 = smul.u32 2, %s27
          %p1665 = scmp.lt.s32.totalorder %s1664, 3
          %s1666 = scalar_select %p1665, %s1664, 3
          %s1667 = smul.addr %s1666, 8
          %s1668 = scalar_lea.vmem %s11, %s1667
        $region80: #{tpu_custom_call.1} parent=71 // pred_fallthru
          _
      $region72: #{tpu_custom_call.1} parent=5 // pred_fallthru
        _
    $region6: #{tpu_custom_call.1} parent=1 // loop_footer
      %s25 = sadd.s32 1, %s21
    $region7: #{tpu_custom_call.1} parent=1 // loop_footer_branch
      %20 = sbr.rel target = $region3
    $region8: #{tpu_custom_call.1} parent=1 // loop_exit
      _
    %1669 = vsyncpa [#allocation3], 1
    %s1670 = scalar_lea.sflag [#allocation3], 1
    %1671 = vsyncpa %s1670, 1

</llo_original>
